<compile_context>
chip_gen: v6e
topology: v6e:2x2x1
jax: 0.10.0
libtpu: 0.0.40
codegen_flags: <defaults>
</compile_context>

<pallas_src>
import math

import jax
import jax.numpy as jnp
from jax.experimental import pallas as pl
from jax.experimental.pallas import tpu as pltpu  # noqa: F401  (TPU backend)

DIM = 32          # embedding dim
HEADS = 4         # number of attention heads
HEAD_DIM = DIM // HEADS
EPS = 1e-5        # nn.LayerNorm default eps


def self_attention_kernel(x_ref, wqkv_ref, bqkv_ref, wo_ref, aux_ref, o_ref):
    B, S, D = x_ref.shape
    x3 = x_ref[...]                      # (B, S, D)
    x2 = x3.reshape(B * S, D)            # token-major 2-D view for the matmuls

    # --- fused QKV projection: one (B*S, D) x (D, 3D) MXU pass --------------
    qkv = (jnp.dot(x2, wqkv_ref[...], preferred_element_type=jnp.float32)
           + bqkv_ref[...])              # (B*S, 3D)
    q = qkv[:, 0 * D:1 * D].reshape(B, S, D)
    k = qkv[:, 1 * D:2 * D].reshape(B, S, D)
    v = qkv[:, 2 * D:3 * D].reshape(B, S, D)

    # --- per-head scaled dot-product attention -------------------------------
    scale = 1.0 / math.sqrt(HEAD_DIM)
    wo = wo_ref[...]                     # (D, D), pre-transposed (y = a @ Wo)
    attn_proj = jnp.zeros((B * S, D), jnp.float32)
    for h in range(HEADS):               # static unroll; HEADS is tiny & fixed
        lo = h * HEAD_DIM
        qh = q[:, :, lo:lo + HEAD_DIM]   # (B, S, HEAD_DIM)
        kh = k[:, :, lo:lo + HEAD_DIM]
        vh = v[:, :, lo:lo + HEAD_DIM]
        # contract on the shared last dim -> no explicit kh.T transpose
        s = jnp.einsum('bqd,bkd->bqk', qh, kh,
                       preferred_element_type=jnp.float32) * scale  # (B, S, S)
        m = jnp.max(s, axis=-1, keepdims=True)
        e = jnp.exp(s - m)
        denom = jnp.sum(e, axis=-1, keepdims=True)
        p = e * pl.reciprocal(denom, approx=True)                   # EUP, not VALU divide
        oh = jnp.einsum('bqk,bkd->bqd', p, vh,
                        preferred_element_type=jnp.float32)         # (B, S, HEAD_DIM)
        # fold the output projection in per head: no concat needed
        attn_proj = attn_proj + jnp.dot(
            oh.reshape(B * S, HEAD_DIM), wo[lo:lo + HEAD_DIM, :],
            preferred_element_type=jnp.float32)                     # (B*S, D)

    # --- residual + LayerNorm -------------------------------------------------
    aux = aux_ref[...]                   # rows: [out-proj bias, ln gamma, ln beta]
    bo, gamma, beta = aux[0:1, :], aux[1:2, :], aux[2:3, :]          # (1, D) each

    y = x2 + attn_proj + bo              # (B*S, D)
    mu = jnp.mean(y, axis=-1, keepdims=True)
    var = jnp.mean((y - mu) * (y - mu), axis=-1, keepdims=True)
    y_hat = (y - mu) * jax.lax.rsqrt(var + EPS)
    out2 = y_hat * gamma + beta
    # TODO(synk): output last dim is D=32 (<128 lanes) so final stores are masked;
    # a lane-dense (B, S*D) layout would need a lane<->sublane refold in-kernel,
    # not worth it at ~2 KiB of output.
    o_ref[...] = out2.reshape(B, S, D).astype(o_ref.dtype)


def self_attention(x, params):
    """x: (B, S, D) float32. params = (wqkv, bqkv, wo, aux) — see init_params."""
    B, S, D = x.shape
    wqkv, bqkv, wo, aux = params
    return pl.pallas_call(
        self_attention_kernel,
        out_shape=jax.ShapeDtypeStruct((B, S, D), x.dtype),
        # No grid: single step, all operands resident in VMEM (full-array blocks).
    )(x, wqkv, bqkv, wo, aux)


def init_params(key, dim):
    """Synthetic parameters matching nn.MultiheadAttention + LayerNorm shapes.

    PyTorch stores in_proj_weight (3*dim, dim) and out_proj.weight (dim, dim);
    here they are pre-transposed & pre-packed so the kernel computes
        qkv = x @ wqkv + bqkv        (wqkv: (dim, 3*dim), bqkv: (1, 3*dim))
        out = heads  @ wo   + bo     (wo:   (dim, dim))
    aux packs [out-proj bias; LayerNorm weight; LayerNorm bias] as rows (3, dim).
    """
    ks = jax.random.split(key, 4)
    wq = 0.1 * jax.random.normal(ks[0], (dim, dim), jnp.float32)
    wk = 0.1 * jax.random.normal(ks[1], (dim, dim), jnp.float32)
    wv = 0.1 * jax.random.normal(ks[2], (dim, dim), jnp.float32)
    wo = 0.1 * jax.random.normal(ks[3], (dim, dim), jnp.float32)
    wqkv = jnp.concatenate([wq, wk, wv], axis=1)          # (dim, 3*dim)
    bqkv = jnp.zeros((1, 3 * dim), jnp.float32)
    aux = jnp.concatenate([
        jnp.zeros((1, dim), jnp.float32),                 # out-proj bias
        jnp.ones((1, dim), jnp.float32),                  # LayerNorm weight
        jnp.zeros((1, dim), jnp.float32),                 # LayerNorm bias
    ], axis=0)                                            # (3, dim)
    return (wqkv, bqkv, wo, aux)


def self_attention_reference(x, params):
    """Pure-JAX reference mirroring nn.MultiheadAttention + residual LayerNorm."""
    wqkv, bqkv, wo, aux = params
    B, S, D = x.shape
    qkv = x.reshape(B * S, D) @ wqkv + bqkv
    q, k, v = qkv[:, :D], qkv[:, D:2 * D], qkv[:, 2 * D:]
    q = q.reshape(B, S, HEADS, HEAD_DIM).transpose(0, 2, 1, 3)
    k = k.reshape(B, S, HEADS, HEAD_DIM).transpose(0, 2, 1, 3)
    v = v.reshape(B, S, HEADS, HEAD_DIM).transpose(0, 2, 1, 3)
    s = jnp.einsum('bhqd,bhkd->bhqk', q, k) / math.sqrt(HEAD_DIM)
    p = jax.nn.softmax(s, axis=-1)
    o = jnp.einsum('bhqk,bhkd->bhqd', p, v).transpose(0, 2, 1, 3).reshape(B, S, D)
    y = x + (o @ wo + aux[0])
    mu = y.mean(-1, keepdims=True)
    var = ((y - mu) ** 2).mean(-1, keepdims=True)
    return (y - mu) * jax.lax.rsqrt(var + EPS) * aux[1] + aux[2]


if __name__ == "__main__":
    key = jax.random.PRNGKey(0)
    k_x, k_p = jax.random.split(key)

    B, S, D = 2, 8, DIM  # batch=2, seq=8, hidden=32, heads=4
    x = jax.random.normal(k_x, (B, S, D), jnp.float32)
    params = init_params(k_p, D)

    out = self_attention(x, params)
    jax.block_until_ready(out)
    assert out.shape == (B, S, D) and out.dtype == jnp.float32

    ref = self_attention_reference(x, params)
    max_err = float(jnp.max(jnp.abs(out - ref)))
    assert jnp.allclose(out, ref, atol=2e-2, rtol=2e-2), max_err

    print("KERNEL_OK")
</pallas_src>

<mosaic_0001>
module attributes {stable_mosaic.version = 11 : i64} {
  func.func @self_attention_kernel(%arg0: memref<2x8x32xf32, #tpu.memory_space<vmem>>, %arg1: memref<32x96xf32, #tpu.memory_space<vmem>>, %arg2: memref<1x96xf32, #tpu.memory_space<vmem>>, %arg3: memref<32x32xf32, #tpu.memory_space<vmem>>, %arg4: memref<3x32xf32, #tpu.memory_space<vmem>>, %arg5: memref<2x8x32xf32, #tpu.memory_space<vmem>>) attributes {dimension_semantics = [], scalar_prefetch = 0 : i64, scratch_operands = 0 : i64, tpu.core_type = #tpu.core_type<tc>} {
    %c0 = arith.constant 0 : index
    %c0_0 = arith.constant 0 : index
    %c0_1 = arith.constant 0 : index
    %0 = vector.load %arg0[%c0, %c0_0, %c0_1] : memref<2x8x32xf32, #tpu.memory_space<vmem>>, vector<2x8x32xf32>
    %1 = vector.shape_cast %0 : vector<2x8x32xf32> to vector<16x32xf32>
    %c0_2 = arith.constant 0 : index
    %c0_3 = arith.constant 0 : index
    %2 = vector.load %arg1[%c0_2, %c0_3] : memref<32x96xf32, #tpu.memory_space<vmem>>, vector<32x96xf32>
    %cst = arith.constant dense<0.000000e+00> : vector<16x96xf32>
    %3 = tpu.matmul %1, %2, %cst {dimension_numbers = #tpu.dot_dimension_numbers<[1], [0], [0], [1], [0, 0, 1, 1], [], []>} : vector<16x32xf32>, vector<32x96xf32>, vector<16x96xf32> -> vector<16x96xf32>
    %c0_4 = arith.constant 0 : index
    %c0_5 = arith.constant 0 : index
    %4 = vector.load %arg2[%c0_4, %c0_5] : memref<1x96xf32, #tpu.memory_space<vmem>>, vector<1x96xf32>
    %5 = vector.broadcast %4 : vector<1x96xf32> to vector<16x96xf32>
    %6 = arith.addf %3, %5 : vector<16x96xf32>
    %7 = vector.extract_strided_slice %6 {offsets = [0, 0], sizes = [16, 32], strides = [1, 1]} : vector<16x96xf32> to vector<16x32xf32>
    %8 = vector.shape_cast %7 : vector<16x32xf32> to vector<2x8x32xf32>
    %9 = vector.extract_strided_slice %6 {offsets = [0, 32], sizes = [16, 32], strides = [1, 1]} : vector<16x96xf32> to vector<16x32xf32>
    %10 = vector.shape_cast %9 : vector<16x32xf32> to vector<2x8x32xf32>
    %11 = vector.extract_strided_slice %6 {offsets = [0, 64], sizes = [16, 32], strides = [1, 1]} : vector<16x96xf32> to vector<16x32xf32>
    %12 = vector.shape_cast %11 : vector<16x32xf32> to vector<2x8x32xf32>
    %c0_6 = arith.constant 0 : index
    %c0_7 = arith.constant 0 : index
    %13 = vector.load %arg3[%c0_6, %c0_7] : memref<32x32xf32, #tpu.memory_space<vmem>>, vector<32x32xf32>
    %cst_8 = arith.constant 0.000000e+00 : f32
    %14 = vector.broadcast %cst_8 : f32 to vector<16x32xf32>
    %15 = vector.extract_strided_slice %8 {offsets = [0, 0, 0], sizes = [2, 8, 8], strides = [1, 1, 1]} : vector<2x8x32xf32> to vector<2x8x8xf32>
    %16 = vector.extract_strided_slice %10 {offsets = [0, 0, 0], sizes = [2, 8, 8], strides = [1, 1, 1]} : vector<2x8x32xf32> to vector<2x8x8xf32>
    %17 = vector.extract_strided_slice %12 {offsets = [0, 0, 0], sizes = [2, 8, 8], strides = [1, 1, 1]} : vector<2x8x32xf32> to vector<2x8x8xf32>
    "tpu.trace_start"() <{level = 10 : i32, message = "bqd,bkd->bqk"}> : () -> ()
    %cst_9 = arith.constant dense<0.000000e+00> : vector<2x8x8xf32>
    %18 = tpu.matmul %15, %16, %cst_9 {dimension_numbers = #tpu.dot_dimension_numbers<[2], [2], [1], [1], [0, 0, 0, 1, 1, 1], [0], [0]>} : vector<2x8x8xf32>, vector<2x8x8xf32>, vector<2x8x8xf32> -> vector<2x8x8xf32>
    "tpu.trace_stop"() : () -> ()
    %cst_10 = arith.constant 0.353553385 : f32
    %19 = vector.broadcast %cst_10 : f32 to vector<2x8x8xf32>
    %20 = arith.mulf %18, %19 : vector<2x8x8xf32>
    %cst_11 = arith.constant dense<0xFF800000> : vector<2x8xf32>
    %21 = vector.multi_reduction <maximumf>, %20, %cst_11 [2] : vector<2x8x8xf32> to vector<2x8xf32>
    %22 = vector.shape_cast %21 : vector<2x8xf32> to vector<2x8x1xf32>
    %23 = vector.broadcast %22 : vector<2x8x1xf32> to vector<2x8x8xf32>
    %24 = arith.subf %20, %23 : vector<2x8x8xf32>
    %25 = math.exp %24 : vector<2x8x8xf32>
    %cst_12 = arith.constant dense<0.000000e+00> : vector<2x8xf32>
    %26 = vector.multi_reduction <add>, %25, %cst_12 [2] : vector<2x8x8xf32> to vector<2x8xf32>
    %27 = vector.shape_cast %26 : vector<2x8xf32> to vector<2x8x1xf32>
    %28 = tpu.reciprocal %27 {approx = true} : vector<2x8x1xf32> -> vector<2x8x1xf32>
    %29 = vector.broadcast %28 : vector<2x8x1xf32> to vector<2x8x8xf32>
    %30 = arith.mulf %25, %29 : vector<2x8x8xf32>
    "tpu.trace_start"() <{level = 10 : i32, message = "bqk,bkd->bqd"}> : () -> ()
    %cst_13 = arith.constant dense<0.000000e+00> : vector<2x8x8xf32>
    %31 = tpu.matmul %30, %17, %cst_13 {dimension_numbers = #tpu.dot_dimension_numbers<[2], [1], [1], [2], [0, 0, 0, 1, 1, 2], [0], [0]>} : vector<2x8x8xf32>, vector<2x8x8xf32>, vector<2x8x8xf32> -> vector<2x8x8xf32>
    "tpu.trace_stop"() : () -> ()
    %32 = vector.shape_cast %31 : vector<2x8x8xf32> to vector<16x8xf32>
    %33 = vector.extract_strided_slice %13 {offsets = [0, 0], sizes = [8, 32], strides = [1, 1]} : vector<32x32xf32> to vector<8x32xf32>
    %cst_14 = arith.constant dense<0.000000e+00> : vector<16x32xf32>
    %34 = tpu.matmul %32, %33, %cst_14 {dimension_numbers = #tpu.dot_dimension_numbers<[1], [0], [0], [1], [0, 0, 1, 1], [], []>} : vector<16x8xf32>, vector<8x32xf32>, vector<16x32xf32> -> vector<16x32xf32>
    %35 = arith.addf %14, %34 : vector<16x32xf32>
    %36 = vector.extract_strided_slice %8 {offsets = [0, 0, 8], sizes = [2, 8, 8], strides = [1, 1, 1]} : vector<2x8x32xf32> to vector<2x8x8xf32>
    %37 = vector.extract_strided_slice %10 {offsets = [0, 0, 8], sizes = [2, 8, 8], strides = [1, 1, 1]} : vector<2x8x32xf32> to vector<2x8x8xf32>
    %38 = vector.extract_strided_slice %12 {offsets = [0, 0, 8], sizes = [2, 8, 8], strides = [1, 1, 1]} : vector<2x8x32xf32> to vector<2x8x8xf32>
    "tpu.trace_start"() <{level = 10 : i32, message = "bqd,bkd->bqk"}> : () -> ()
    %cst_15 = arith.constant dense<0.000000e+00> : vector<2x8x8xf32>
    %39 = tpu.matmul %36, %37, %cst_15 {dimension_numbers = #tpu.dot_dimension_numbers<[2], [2], [1], [1], [0, 0, 0, 1, 1, 1], [0], [0]>} : vector<2x8x8xf32>, vector<2x8x8xf32>, vector<2x8x8xf32> -> vector<2x8x8xf32>
    "tpu.trace_stop"() : () -> ()
    %cst_16 = arith.constant 0.353553385 : f32
    %40 = vector.broadcast %cst_16 : f32 to vector<2x8x8xf32>
    %41 = arith.mulf %39, %40 : vector<2x8x8xf32>
    %cst_17 = arith.constant dense<0xFF800000> : vector<2x8xf32>
    %42 = vector.multi_reduction <maximumf>, %41, %cst_17 [2] : vector<2x8x8xf32> to vector<2x8xf32>
    %43 = vector.shape_cast %42 : vector<2x8xf32> to vector<2x8x1xf32>
    %44 = vector.broadcast %43 : vector<2x8x1xf32> to vector<2x8x8xf32>
    %45 = arith.subf %41, %44 : vector<2x8x8xf32>
    %46 = math.exp %45 : vector<2x8x8xf32>
    %cst_18 = arith.constant dense<0.000000e+00> : vector<2x8xf32>
    %47 = vector.multi_reduction <add>, %46, %cst_18 [2] : vector<2x8x8xf32> to vector<2x8xf32>
    %48 = vector.shape_cast %47 : vector<2x8xf32> to vector<2x8x1xf32>
    %49 = tpu.reciprocal %48 {approx = true} : vector<2x8x1xf32> -> vector<2x8x1xf32>
    %50 = vector.broadcast %49 : vector<2x8x1xf32> to vector<2x8x8xf32>
    %51 = arith.mulf %46, %50 : vector<2x8x8xf32>
    "tpu.trace_start"() <{level = 10 : i32, message = "bqk,bkd->bqd"}> : () -> ()
    %cst_19 = arith.constant dense<0.000000e+00> : vector<2x8x8xf32>
    %52 = tpu.matmul %51, %38, %cst_19 {dimension_numbers = #tpu.dot_dimension_numbers<[2], [1], [1], [2], [0, 0, 0, 1, 1, 2], [0], [0]>} : vector<2x8x8xf32>, vector<2x8x8xf32>, vector<2x8x8xf32> -> vector<2x8x8xf32>
    "tpu.trace_stop"() : () -> ()
    %53 = vector.shape_cast %52 : vector<2x8x8xf32> to vector<16x8xf32>
    %54 = vector.extract_strided_slice %13 {offsets = [8, 0], sizes = [8, 32], strides = [1, 1]} : vector<32x32xf32> to vector<8x32xf32>
    %cst_20 = arith.constant dense<0.000000e+00> : vector<16x32xf32>
    %55 = tpu.matmul %53, %54, %cst_20 {dimension_numbers = #tpu.dot_dimension_numbers<[1], [0], [0], [1], [0, 0, 1, 1], [], []>} : vector<16x8xf32>, vector<8x32xf32>, vector<16x32xf32> -> vector<16x32xf32>
    %56 = arith.addf %35, %55 : vector<16x32xf32>
    %57 = vector.extract_strided_slice %8 {offsets = [0, 0, 16], sizes = [2, 8, 8], strides = [1, 1, 1]} : vector<2x8x32xf32> to vector<2x8x8xf32>
    %58 = vector.extract_strided_slice %10 {offsets = [0, 0, 16], sizes = [2, 8, 8], strides = [1, 1, 1]} : vector<2x8x32xf32> to vector<2x8x8xf32>
    %59 = vector.extract_strided_slice %12 {offsets = [0, 0, 16], sizes = [2, 8, 8], strides = [1, 1, 1]} : vector<2x8x32xf32> to vector<2x8x8xf32>
    "tpu.trace_start"() <{level = 10 : i32, message = "bqd,bkd->bqk"}> : () -> ()
    %cst_21 = arith.constant dense<0.000000e+00> : vector<2x8x8xf32>
    %60 = tpu.matmul %57, %58, %cst_21 {dimension_numbers = #tpu.dot_dimension_numbers<[2], [2], [1], [1], [0, 0, 0, 1, 1, 1], [0], [0]>} : vector<2x8x8xf32>, vector<2x8x8xf32>, vector<2x8x8xf32> -> vector<2x8x8xf32>
    "tpu.trace_stop"() : () -> ()
    %cst_22 = arith.constant 0.353553385 : f32
    %61 = vector.broadcast %cst_22 : f32 to vector<2x8x8xf32>
    %62 = arith.mulf %60, %61 : vector<2x8x8xf32>
    %cst_23 = arith.constant dense<0xFF800000> : vector<2x8xf32>
    %63 = vector.multi_reduction <maximumf>, %62, %cst_23 [2] : vector<2x8x8xf32> to vector<2x8xf32>
    %64 = vector.shape_cast %63 : vector<2x8xf32> to vector<2x8x1xf32>
    %65 = vector.broadcast %64 : vector<2x8x1xf32> to vector<2x8x8xf32>
    %66 = arith.subf %62, %65 : vector<2x8x8xf32>
    %67 = math.exp %66 : vector<2x8x8xf32>
    %cst_24 = arith.constant dense<0.000000e+00> : vector<2x8xf32>
    %68 = vector.multi_reduction <add>, %67, %cst_24 [2] : vector<2x8x8xf32> to vector<2x8xf32>
    %69 = vector.shape_cast %68 : vector<2x8xf32> to vector<2x8x1xf32>
    %70 = tpu.reciprocal %69 {approx = true} : vector<2x8x1xf32> -> vector<2x8x1xf32>
    %71 = vector.broadcast %70 : vector<2x8x1xf32> to vector<2x8x8xf32>
    %72 = arith.mulf %67, %71 : vector<2x8x8xf32>
    "tpu.trace_start"() <{level = 10 : i32, message = "bqk,bkd->bqd"}> : () -> ()
    %cst_25 = arith.constant dense<0.000000e+00> : vector<2x8x8xf32>
    %73 = tpu.matmul %72, %59, %cst_25 {dimension_numbers = #tpu.dot_dimension_numbers<[2], [1], [1], [2], [0, 0, 0, 1, 1, 2], [0], [0]>} : vector<2x8x8xf32>, vector<2x8x8xf32>, vector<2x8x8xf32> -> vector<2x8x8xf32>
    "tpu.trace_stop"() : () -> ()
    %74 = vector.shape_cast %73 : vector<2x8x8xf32> to vector<16x8xf32>
    %75 = vector.extract_strided_slice %13 {offsets = [16, 0], sizes = [8, 32], strides = [1, 1]} : vector<32x32xf32> to vector<8x32xf32>
    %cst_26 = arith.constant dense<0.000000e+00> : vector<16x32xf32>
    %76 = tpu.matmul %74, %75, %cst_26 {dimension_numbers = #tpu.dot_dimension_numbers<[1], [0], [0], [1], [0, 0, 1, 1], [], []>} : vector<16x8xf32>, vector<8x32xf32>, vector<16x32xf32> -> vector<16x32xf32>
    %77 = arith.addf %56, %76 : vector<16x32xf32>
    %78 = vector.extract_strided_slice %8 {offsets = [0, 0, 24], sizes = [2, 8, 8], strides = [1, 1, 1]} : vector<2x8x32xf32> to vector<2x8x8xf32>
    %79 = vector.extract_strided_slice %10 {offsets = [0, 0, 24], sizes = [2, 8, 8], strides = [1, 1, 1]} : vector<2x8x32xf32> to vector<2x8x8xf32>
    %80 = vector.extract_strided_slice %12 {offsets = [0, 0, 24], sizes = [2, 8, 8], strides = [1, 1, 1]} : vector<2x8x32xf32> to vector<2x8x8xf32>
    "tpu.trace_start"() <{level = 10 : i32, message = "bqd,bkd->bqk"}> : () -> ()
    %cst_27 = arith.constant dense<0.000000e+00> : vector<2x8x8xf32>
    %81 = tpu.matmul %78, %79, %cst_27 {dimension_numbers = #tpu.dot_dimension_numbers<[2], [2], [1], [1], [0, 0, 0, 1, 1, 1], [0], [0]>} : vector<2x8x8xf32>, vector<2x8x8xf32>, vector<2x8x8xf32> -> vector<2x8x8xf32>
    "tpu.trace_stop"() : () -> ()
    %cst_28 = arith.constant 0.353553385 : f32
    %82 = vector.broadcast %cst_28 : f32 to vector<2x8x8xf32>
    %83 = arith.mulf %81, %82 : vector<2x8x8xf32>
    %cst_29 = arith.constant dense<0xFF800000> : vector<2x8xf32>
    %84 = vector.multi_reduction <maximumf>, %83, %cst_29 [2] : vector<2x8x8xf32> to vector<2x8xf32>
    %85 = vector.shape_cast %84 : vector<2x8xf32> to vector<2x8x1xf32>
    %86 = vector.broadcast %85 : vector<2x8x1xf32> to vector<2x8x8xf32>
    %87 = arith.subf %83, %86 : vector<2x8x8xf32>
    %88 = math.exp %87 : vector<2x8x8xf32>
    %cst_30 = arith.constant dense<0.000000e+00> : vector<2x8xf32>
    %89 = vector.multi_reduction <add>, %88, %cst_30 [2] : vector<2x8x8xf32> to vector<2x8xf32>
    %90 = vector.shape_cast %89 : vector<2x8xf32> to vector<2x8x1xf32>
    %91 = tpu.reciprocal %90 {approx = true} : vector<2x8x1xf32> -> vector<2x8x1xf32>
    %92 = vector.broadcast %91 : vector<2x8x1xf32> to vector<2x8x8xf32>
    %93 = arith.mulf %88, %92 : vector<2x8x8xf32>
    "tpu.trace_start"() <{level = 10 : i32, message = "bqk,bkd->bqd"}> : () -> ()
    %cst_31 = arith.constant dense<0.000000e+00> : vector<2x8x8xf32>
    %94 = tpu.matmul %93, %80, %cst_31 {dimension_numbers = #tpu.dot_dimension_numbers<[2], [1], [1], [2], [0, 0, 0, 1, 1, 2], [0], [0]>} : vector<2x8x8xf32>, vector<2x8x8xf32>, vector<2x8x8xf32> -> vector<2x8x8xf32>
    "tpu.trace_stop"() : () -> ()
    %95 = vector.shape_cast %94 : vector<2x8x8xf32> to vector<16x8xf32>
    %96 = vector.extract_strided_slice %13 {offsets = [24, 0], sizes = [8, 32], strides = [1, 1]} : vector<32x32xf32> to vector<8x32xf32>
    %cst_32 = arith.constant dense<0.000000e+00> : vector<16x32xf32>
    %97 = tpu.matmul %95, %96, %cst_32 {dimension_numbers = #tpu.dot_dimension_numbers<[1], [0], [0], [1], [0, 0, 1, 1], [], []>} : vector<16x8xf32>, vector<8x32xf32>, vector<16x32xf32> -> vector<16x32xf32>
    %98 = arith.addf %77, %97 : vector<16x32xf32>
    %c0_33 = arith.constant 0 : index
    %c0_34 = arith.constant 0 : index
    %99 = vector.load %arg4[%c0_33, %c0_34] : memref<3x32xf32, #tpu.memory_space<vmem>>, vector<3x32xf32>
    %100 = vector.extract_strided_slice %99 {offsets = [0, 0], sizes = [1, 32], strides = [1, 1]} : vector<3x32xf32> to vector<1x32xf32>
    %101 = vector.extract_strided_slice %99 {offsets = [1, 0], sizes = [1, 32], strides = [1, 1]} : vector<3x32xf32> to vector<1x32xf32>
    %102 = vector.extract_strided_slice %99 {offsets = [2, 0], sizes = [1, 32], strides = [1, 1]} : vector<3x32xf32> to vector<1x32xf32>
    %103 = arith.addf %1, %98 : vector<16x32xf32>
    %104 = vector.broadcast %100 : vector<1x32xf32> to vector<16x32xf32>
    %105 = arith.addf %103, %104 : vector<16x32xf32>
    %cst_35 = arith.constant dense<0.000000e+00> : vector<16xf32>
    %106 = vector.multi_reduction <add>, %105, %cst_35 [1] : vector<16x32xf32> to vector<16xf32>
    %107 = vector.shape_cast %106 : vector<16xf32> to vector<16x1xf32>
    %cst_36 = arith.constant 3.200000e+01 : f32
    %108 = vector.broadcast %cst_36 : f32 to vector<16x1xf32>
    %109 = arith.divf %107, %108 : vector<16x1xf32>
    %110 = vector.broadcast %109 : vector<16x1xf32> to vector<16x32xf32>
    %111 = arith.subf %105, %110 : vector<16x32xf32>
    %112 = vector.broadcast %109 : vector<16x1xf32> to vector<16x32xf32>
    %113 = arith.subf %105, %112 : vector<16x32xf32>
    %114 = arith.mulf %111, %113 : vector<16x32xf32>
    %cst_37 = arith.constant dense<0.000000e+00> : vector<16xf32>
    %115 = vector.multi_reduction <add>, %114, %cst_37 [1] : vector<16x32xf32> to vector<16xf32>
    %116 = vector.shape_cast %115 : vector<16xf32> to vector<16x1xf32>
    %cst_38 = arith.constant 3.200000e+01 : f32
    %117 = vector.broadcast %cst_38 : f32 to vector<16x1xf32>
    %118 = arith.divf %116, %117 : vector<16x1xf32>
    %119 = vector.broadcast %109 : vector<16x1xf32> to vector<16x32xf32>
    %120 = arith.subf %105, %119 : vector<16x32xf32>
    %cst_39 = arith.constant 9.99999974E-6 : f32
    %121 = vector.broadcast %cst_39 : f32 to vector<16x1xf32>
    %122 = arith.addf %118, %121 : vector<16x1xf32>
    %123 = math.rsqrt %122 : vector<16x1xf32>
    %124 = vector.broadcast %123 : vector<16x1xf32> to vector<16x32xf32>
    %125 = arith.mulf %120, %124 : vector<16x32xf32>
    %126 = vector.broadcast %101 : vector<1x32xf32> to vector<16x32xf32>
    %127 = arith.mulf %125, %126 : vector<16x32xf32>
    %128 = vector.broadcast %102 : vector<1x32xf32> to vector<16x32xf32>
    %129 = arith.addf %127, %128 : vector<16x32xf32>
    %130 = vector.shape_cast %129 : vector<16x32xf32> to vector<2x8x32xf32>
    %c0_40 = arith.constant 0 : index
    %c0_41 = arith.constant 0 : index
    %c0_42 = arith.constant 0 : index
    %131 = vector.load %arg5[%c0_40, %c0_41, %c0_42] : memref<2x8x32xf32, #tpu.memory_space<vmem>>, vector<2x8x32xf32>
    tpu.vector_store %arg5[%c0_40, %c0_41, %c0_42], %130 {strides = array<i32>} : memref<2x8x32xf32, #tpu.memory_space<vmem>>, vector<2x8x32xf32>,
    return
  }
}

</mosaic_0001>

<llo_original>
// kernel: tpu_custom_call.1
$region0: #{tpu_custom_call.1}
  #allocation0 [shape = 'u32[]', space=smem, size = 0x4, offset = 0x4, fixed_abs, tag = 'smem constant byte address 0x4 - core index']
  #allocation1 [shape = 'u32[144,128]{1,0:T(1,128)}', space=vmem, size = 0x12000, scoped, tag = 'internal scratch']
  %s0 = inlined_call_operand.hbm [shape: f32[2,8,32], index: 0, kind: input, shape index: {}]
  %s1 = inlined_call_operand.hbm [shape: f32[32,96], index: 1, kind: input, shape index: {}]
  %s2 = inlined_call_operand.vmem [shape: f32[1,96], index: 2, kind: input, shape index: {}]
  %s3 = inlined_call_operand.hbm [shape: f32[32,32], index: 3, kind: input, shape index: {}]
  %s4 = inlined_call_operand.vmem [shape: f32[3,32], index: 4, kind: input, shape index: {}]
  %s5 = inlined_call_operand.hbm [shape: f32[2,8,32], index: 5, kind: output, shape index: {}]
  %s6 = sld [smem:[#allocation0]]
  $region42: #{tpu_custom_call.1} parent=0
    _
  %s8 = ssub.s32 1, %s6
  %s9 = scalar_select 0, %s8, %s6
  $region1: #{tpu_custom_call.1} parent=0
    #allocation2 [shape = 'u8[8192]{0}', space=vmem, size = 0x2000, scoped, tag = 'input window, operand 0, single buffered']
    #allocation3 [shape = 's32[1]{0}', space=sflag, size = 0x4, scoped, tag = 'scoped memory for tpu_custom_call.1']
    #allocation4 [shape = 's32[1]{0}', space=sflag, size = 0x4, scoped, tag = 'scoped memory for tpu_custom_call.1']
    #allocation5 [shape = 'u8[16384]{0}', space=vmem, size = 0x4000, scoped, tag = 'input window, operand 1, single buffered']
    #allocation6 [shape = 's32[1]{0}', space=sflag, size = 0x4, scoped, tag = 'scoped memory for tpu_custom_call.1']
    #allocation7 [shape = 'u8[16384]{0}', space=vmem, size = 0x4000, scoped, tag = 'input window, operand 3, single buffered']
    #allocation8 [shape = 'u8[8192]{0}', space=vmem, size = 0x2000, scoped, tag = 'output window, operand 0, single buffered']
    %10 = vsyncpa [#allocation3], 0
    %11 = vsyncpa [#allocation6], 0
    %12 = vsyncpa [#allocation4], 0
    // Predicated region
    $region2: #{tpu_custom_call.1} parent=1 // pred_check
      _
    $region3: #{tpu_custom_call.1} parent=1 // pred_check_branch
      %14 = sbr.rel (0) target = $region5
    $region4: #{tpu_custom_call.1} parent=1 // pred_region
      %s16 = ssub.s32 256, 256
      %17 = vsyncadd [#allocation3], %s16
      %s18 = sshll.u32 [#allocation2], 4
      %s19 = int_to_ptr.vmem [resolvable:$true] %s18
      %24 = dma.hbm_to_vmem [thread:$0]  %s0, 256, %s19, [#allocation3], 128, 128, 8
    $region5: #{tpu_custom_call.1} parent=1 // pred_fallthru
      _
    // Predicated region
    $region6: #{tpu_custom_call.1} parent=1 // pred_check
      _
    $region7: #{tpu_custom_call.1} parent=1 // pred_check_branch
      %26 = sbr.rel (0) target = $region9
    $region8: #{tpu_custom_call.1} parent=1 // pred_region
      %s28 = ssub.s32 512, 512
      %29 = vsyncadd [#allocation6], %s28
      %s30 = sshll.u32 [#allocation5], 4
      %s31 = int_to_ptr.vmem [resolvable:$true] %s30
      %36 = dma.hbm_to_vmem [thread:$0]  %s1, 512, %s31, [#allocation6], 128, 128, 8
    $region9: #{tpu_custom_call.1} parent=1 // pred_fallthru
      _
    // Predicated region
    $region10: #{tpu_custom_call.1} parent=1 // pred_check
      _
    $region11: #{tpu_custom_call.1} parent=1 // pred_check_branch
      %38 = sbr.rel (0) target = $region13
    $region12: #{tpu_custom_call.1} parent=1 // pred_region
      _
    $region13: #{tpu_custom_call.1} parent=1 // pred_fallthru
      _
    // Predicated region
    $region14: #{tpu_custom_call.1} parent=1 // pred_check
      _
    $region15: #{tpu_custom_call.1} parent=1 // pred_check_branch
      %40 = sbr.rel (0) target = $region17
    $region16: #{tpu_custom_call.1} parent=1 // pred_region
      %s42 = ssub.s32 512, 512
      %43 = vsyncadd [#allocation6], %s42
      %s44 = sshll.u32 [#allocation7], 4
      %s45 = int_to_ptr.vmem [resolvable:$true] %s44
      %50 = dma.hbm_to_vmem [thread:$0]  %s3, 512, %s45, [#allocation6], 128, 128, 8
    $region17: #{tpu_custom_call.1} parent=1 // pred_fallthru
      _
    // Predicated region
    $region18: #{tpu_custom_call.1} parent=1 // pred_check
      _
    $region19: #{tpu_custom_call.1} parent=1 // pred_check_branch
      %52 = sbr.rel (0) target = $region21
    $region20: #{tpu_custom_call.1} parent=1 // pred_region
      _
    $region21: #{tpu_custom_call.1} parent=1 // pred_fallthru
      _
    // Predicated region
    $region22: #{tpu_custom_call.1} parent=1 // pred_check
      _
    $region23: #{tpu_custom_call.1} parent=1 // pred_check_branch
      %54 = sbr.rel (0) target = $region25
    $region24: #{tpu_custom_call.1} parent=1 // pred_region
      %55 = dma.done [#allocation3], 256
    $region25: #{tpu_custom_call.1} parent=1 // pred_fallthru
      _
    // Predicated region
    $region26: #{tpu_custom_call.1} parent=1 // pred_check
      _
    $region27: #{tpu_custom_call.1} parent=1 // pred_check_branch
      %57 = sbr.rel (0) target = $region29
    $region28: #{tpu_custom_call.1} parent=1 // pred_region
      %58 = dma.done [#allocation6], 512
    $region29: #{tpu_custom_call.1} parent=1 // pred_fallthru
      _
    // Predicated region
    $region30: #{tpu_custom_call.1} parent=1 // pred_check
      _
    $region31: #{tpu_custom_call.1} parent=1 // pred_check_branch
      %60 = sbr.rel (0) target = $region33
    $region32: #{tpu_custom_call.1} parent=1 // pred_region
      %61 = dma.done [#allocation6], 512
    $region33: #{tpu_custom_call.1} parent=1 // pred_fallthru
      _
    %v62 = vld [vmem:[#allocation2] sm:$0xff]
    %v63 = vld [vmem:[#allocation2 + $0x8] sm:$0xff]
    %v64 = vld [vmem:[#allocation5] sm:$0xff]
    %v65 = vld [vmem:[#allocation5 + $0x8] sm:$0xff]
    %v66 = vld [vmem:[#allocation5 + $0x10] sm:$0xff]
    %v67 = vld [vmem:[#allocation5 + $0x18] sm:$0xff]
    %v68 = vld [vmem:[%s2] sm:$0x1]
    %v70 = vlaneseq
    %v71 = vshrl.u32 %v70, 7
    %v72 = vsub.s32 0, %v71
    %v73 = vrot.slane %v68, %v72
    %vm75 = vcmask 261120
    %v77 = vsel %vm75, %v62, 0
    %v80 = vsel %vm75, %v63, 0
    %82 = vmatprep.subr.mxu0 0.0
    %83 = vmatpush1.msra.mxu0 0.0
    %84 = vmatprep.subr.mxu0 0.0
    %85 = vmatpush1.msra.mxu0 0.0
    %86 = vmatprep.subr.mxu0 0.0
    %87 = vmatpush1.msra.mxu0 0.0
    %88 = vmatprep.subr.mxu0 0.0
    %89 = vmatpush1.msra.mxu0 0.0
    %90 = vmatprep.subr.mxu0 0.0
    %91 = vmatpush1.msra.mxu0 0.0
    %92 = vmatprep.subr.mxu0 0.0
    %93 = vmatpush1.msra.mxu0 0.0
    %94 = vmatprep.subr.mxu0 0.0
    %95 = vmatpush1.msra.mxu0 0.0
    %96 = vmatprep.subr.mxu0 0.0
    %97 = vmatpush1.msra.mxu0 0.0
    %98 = vmatprep.subr.mxu0 0.0
    %99 = vmatpush1.msra.mxu0 0.0
    %100 = vmatprep.subr.mxu0 0.0
    %101 = vmatpush1.msra.mxu0 0.0
    %102 = vmatprep.subr.mxu0 0.0
    %103 = vmatpush1.msra.mxu0 0.0
    %104 = vmatprep.subr.mxu0 0.0
    %105 = vmatpush1.msra.mxu0 0.0
    %106 = vmatprep.subr.mxu0 0.0
    %107 = vmatpush1.msra.mxu0 %v67
    %108 = vmatprep.subr.mxu0 0.0
    %109 = vmatpush1.msra.mxu0 %v66
    %110 = vmatprep.subr.mxu0 0.0
    %111 = vmatpush1.msra.mxu0 %v65
    %112 = vmatprep.subr.mxu0 0.0
    %113 = vmatpush1.msra.mxu0 %v64
    %114 = vmatprep.subr.mxu0 0.0
    %115 = vmatpush2.msra.mxu0 0.0
    %116 = vmatprep.subr.mxu0 0.0
    %117 = vmatpush2.msra.mxu0 0.0
    %118 = vmatprep.subr.mxu0 0.0
    %119 = vmatpush2.msra.mxu0 0.0
    %120 = vmatprep.subr.mxu0 0.0
    %121 = vmatpush2.msra.mxu0 0.0
    %122 = vmatprep.subr.mxu0 0.0
    %123 = vmatpush2.msra.mxu0 0.0
    %124 = vmatprep.subr.mxu0 0.0
    %125 = vmatpush2.msra.mxu0 0.0
    %126 = vmatprep.subr.mxu0 0.0
    %127 = vmatpush2.msra.mxu0 0.0
    %128 = vmatprep.subr.mxu0 0.0
    %129 = vmatpush2.msra.mxu0 0.0
    %130 = vmatprep.subr.mxu0 0.0
    %131 = vmatpush2.msra.mxu0 0.0
    %132 = vmatprep.subr.mxu0 0.0
    %133 = vmatpush2.msra.mxu0 0.0
    %134 = vmatprep.subr.mxu0 0.0
    %135 = vmatpush2.msra.mxu0 0.0
    %136 = vmatprep.subr.mxu0 0.0
    %137 = vmatpush2.msra.mxu0 0.0
    %138 = vmatprep.subr.mxu0 0.0
    %139 = vmatpush2.msra.mxu0 0.0
    %140 = vmatprep.subr.mxu0 0.0
    %141 = vmatpush2.msra.mxu0 0.0
    %142 = vmatprep.subr.mxu0 0.0
    %143 = vmatpush2.msra.mxu0 0.0
    %144 = vmatprep.subr.mxu0 0.0
    %145 = vmatpush2.msra.mxu0 0.0
    %146 = vmatprep.mubr.f32.mxu0 0.0
    %147 = vmatmul.mubr.f32.gmra.mxu0 %v77
    %v148 = vpop.f32.mrf.mxu0
    %v149 = vadd.f32 %v73, %v148
    %v150 = vpop.f32.mrf.mxu0
    %151 = vmatprep.mubr.f32.mxu0 0.0
    %152 = vmatmul.mubr.f32.gmra.mxu0 %v80
    %v153 = vpop.f32.mrf.mxu0
    %v154 = vadd.f32 %v73, %v153
    %v155 = vpop.f32.mrf.mxu0
    %156 = vdwg.mxu0
    %v157 = vld [vmem:[#allocation7] sm:$0xff]
    %v158 = vld [vmem:[#allocation7 + $0x8] sm:$0xff]
    %v159 = vld [vmem:[#allocation7 + $0x10] sm:$0xff]
    %v160 = vld [vmem:[#allocation7 + $0x18] sm:$0xff]
    %162 = vrot.lane.b32.xlu0 %v149, 96
    %v163 = vpop.permute.xlu0 %162
    %vm164 = vcmask 64512
    %v165 = vsel %vm164, %v149, 0
    %v167 = vsel %vm164, %v163, 0
    %169 = vmatprep.subr.mxu0 0.0
    %170 = vmatpush1.xpose.msra.mxu0 0.0
    %171 = vmatprep.subr.mxu0 0.0
    %172 = vmatpush1.xpose.msra.mxu0 0.0
    %173 = vmatprep.subr.mxu0 0.0
    %174 = vmatpush1.xpose.msra.mxu0 0.0
    %175 = vmatprep.subr.mxu0 0.0
    %176 = vmatpush1.xpose.msra.mxu0 0.0
    %177 = vmatprep.subr.mxu0 0.0
    %178 = vmatpush1.xpose.msra.mxu0 0.0
    %179 = vmatprep.subr.mxu0 0.0
    %180 = vmatpush1.xpose.msra.mxu0 0.0
    %181 = vmatprep.subr.mxu0 0.0
    %182 = vmatpush1.xpose.msra.mxu0 0.0
    %183 = vmatprep.subr.mxu0 0.0
    %184 = vmatpush1.xpose.msra.mxu0 0.0
    %185 = vmatprep.subr.mxu0 0.0
    %186 = vmatpush1.xpose.msra.mxu0 0.0
    %187 = vmatprep.subr.mxu0 0.0
    %188 = vmatpush1.xpose.msra.mxu0 0.0
    %189 = vmatprep.subr.mxu0 0.0
    %190 = vmatpush1.xpose.msra.mxu0 0.0
    %191 = vmatprep.subr.mxu0 0.0
    %192 = vmatpush1.xpose.msra.mxu0 0.0
    %193 = vmatprep.subr.mxu0 0.0
    %194 = vmatpush1.xpose.msra.mxu0 0.0
    %195 = vmatprep.subr.mxu0 0.0
    %196 = vmatpush1.xpose.msra.mxu0 0.0
    %197 = vmatprep.subr.mxu0 0.0
    %198 = vmatpush1.xpose.msra.mxu0 0.0
    %199 = vmatprep.subr.mxu0 0.0
    %200 = vmatpush1.xpose.msra.mxu0 %v167
    %201 = vmatprep.subr.mxu0 0.0
    %202 = vmatpush2.xpose.msra.mxu0 0.0
    %203 = vmatprep.subr.mxu0 0.0
    %204 = vmatpush2.xpose.msra.mxu0 0.0
    %205 = vmatprep.subr.mxu0 0.0
    %206 = vmatpush2.xpose.msra.mxu0 0.0
    %207 = vmatprep.subr.mxu0 0.0
    %208 = vmatpush2.xpose.msra.mxu0 0.0
    %209 = vmatprep.subr.mxu0 0.0
    %210 = vmatpush2.xpose.msra.mxu0 0.0
    %211 = vmatprep.subr.mxu0 0.0
    %212 = vmatpush2.xpose.msra.mxu0 0.0
    %213 = vmatprep.subr.mxu0 0.0
    %214 = vmatpush2.xpose.msra.mxu0 0.0
    %215 = vmatprep.subr.mxu0 0.0
    %216 = vmatpush2.xpose.msra.mxu0 0.0
    %217 = vmatprep.subr.mxu0 0.0
    %218 = vmatpush2.xpose.msra.mxu0 0.0
    %219 = vmatprep.subr.mxu0 0.0
    %220 = vmatpush2.xpose.msra.mxu0 0.0
    %221 = vmatprep.subr.mxu0 0.0
    %222 = vmatpush2.xpose.msra.mxu0 0.0
    %223 = vmatprep.subr.mxu0 0.0
    %224 = vmatpush2.xpose.msra.mxu0 0.0
    %225 = vmatprep.subr.mxu0 0.0
    %226 = vmatpush2.xpose.msra.mxu0 0.0
    %227 = vmatprep.subr.mxu0 0.0
    %228 = vmatpush2.xpose.msra.mxu0 0.0
    %229 = vmatprep.subr.mxu0 0.0
    %230 = vmatpush2.xpose.msra.mxu0 0.0
    %231 = vmatprep.subr.mxu0 0.0
    %232 = vmatpush2.xpose.msra.mxu0 0.0
    %233 = vmatprep.mubr.f32.mxu0 0.0
    %234 = vmatmul.mubr.f32.gmra.mxu0 %v165
    %v235 = vpop.f32.mrf.mxu0
    %v236 = vadd.f32 0.0, %v235
    %v237 = vpop.f32.mrf.mxu0
    %238 = vdwg.mxu0
    %240 = vrot.lane.b32.xlu0 %v154, 96
    %v241 = vpop.permute.xlu0 %240
    %v242 = vsel %vm164, %v154, 0
    %v244 = vsel %vm164, %v241, 0
    %246 = vmatprep.subr.mxu0 0.0
    %247 = vmatpush1.xpose.msra.mxu0 0.0
    %248 = vmatprep.subr.mxu0 0.0
    %249 = vmatpush1.xpose.msra.mxu0 0.0
    %250 = vmatprep.subr.mxu0 0.0
    %251 = vmatpush1.xpose.msra.mxu0 0.0
    %252 = vmatprep.subr.mxu0 0.0
    %253 = vmatpush1.xpose.msra.mxu0 0.0
    %254 = vmatprep.subr.mxu0 0.0
    %255 = vmatpush1.xpose.msra.mxu0 0.0
    %256 = vmatprep.subr.mxu0 0.0
    %257 = vmatpush1.xpose.msra.mxu0 0.0
    %258 = vmatprep.subr.mxu0 0.0
    %259 = vmatpush1.xpose.msra.mxu0 0.0
    %260 = vmatprep.subr.mxu0 0.0
    %261 = vmatpush1.xpose.msra.mxu0 0.0
    %262 = vmatprep.subr.mxu0 0.0
    %263 = vmatpush1.xpose.msra.mxu0 0.0
    %264 = vmatprep.subr.mxu0 0.0
    %265 = vmatpush1.xpose.msra.mxu0 0.0
    %266 = vmatprep.subr.mxu0 0.0
    %267 = vmatpush1.xpose.msra.mxu0 0.0
    %268 = vmatprep.subr.mxu0 0.0
    %269 = vmatpush1.xpose.msra.mxu0 0.0
    %270 = vmatprep.subr.mxu0 0.0
    %271 = vmatpush1.xpose.msra.mxu0 0.0
    %272 = vmatprep.subr.mxu0 0.0
    %273 = vmatpush1.xpose.msra.mxu0 0.0
    %274 = vmatprep.subr.mxu0 0.0
    %275 = vmatpush1.xpose.msra.mxu0 0.0
    %276 = vmatprep.subr.mxu0 0.0
    %277 = vmatpush1.xpose.msra.mxu0 %v244
    %278 = vmatprep.subr.mxu0 0.0
    %279 = vmatpush2.xpose.msra.mxu0 0.0
    %280 = vmatprep.subr.mxu0 0.0
    %281 = vmatpush2.xpose.msra.mxu0 0.0
    %282 = vmatprep.subr.mxu0 0.0
    %283 = vmatpush2.xpose.msra.mxu0 0.0
    %284 = vmatprep.subr.mxu0 0.0
    %285 = vmatpush2.xpose.msra.mxu0 0.0
    %286 = vmatprep.subr.mxu0 0.0
    %287 = vmatpush2.xpose.msra.mxu0 0.0
    %288 = vmatprep.subr.mxu0 0.0
    %289 = vmatpush2.xpose.msra.mxu0 0.0
    %290 = vmatprep.subr.mxu0 0.0
    %291 = vmatpush2.xpose.msra.mxu0 0.0
    %292 = vmatprep.subr.mxu0 0.0
    %293 = vmatpush2.xpose.msra.mxu0 0.0
    %294 = vmatprep.subr.mxu0 0.0
    %295 = vmatpush2.xpose.msra.mxu0 0.0
    %296 = vmatprep.subr.mxu0 0.0
    %297 = vmatpush2.xpose.msra.mxu0 0.0
    %298 = vmatprep.subr.mxu0 0.0
    %299 = vmatpush2.xpose.msra.mxu0 0.0
    %300 = vmatprep.subr.mxu0 0.0
    %301 = vmatpush2.xpose.msra.mxu0 0.0
    %302 = vmatprep.subr.mxu0 0.0
    %303 = vmatpush2.xpose.msra.mxu0 0.0
    %304 = vmatprep.subr.mxu0 0.0
    %305 = vmatpush2.xpose.msra.mxu0 0.0
    %306 = vmatprep.subr.mxu0 0.0
    %307 = vmatpush2.xpose.msra.mxu0 0.0
    %308 = vmatprep.subr.mxu0 0.0
    %309 = vmatpush2.xpose.msra.mxu0 0.0
    %310 = vmatprep.mubr.f32.mxu0 0.0
    %311 = vmatmul.mubr.f32.gmra.mxu0 %v242
    %v312 = vpop.f32.mrf.mxu0
    %v313 = vadd.f32 0.0, %v312
    %v314 = vpop.f32.mrf.mxu0
    %315 = vdwg.mxu0
    %v316 = vmul.f32 %v236, 0.35355338
    %v317 = vmul.f32 %v313, 0.35355338
    %v318 = vsel %vm164, %v316, -inf
    %319 = vmax.xlane.f32.xlu0 %v318
    %v320 = vpop.xlane.xlu0 %319
    %v321 = vsel %vm164, %v317, -inf
    %322 = vmax.xlane.f32.xlu0 %v321
    %v323 = vpop.xlane.xlu0 %322
    %v324 = vsub.f32 %v316, %v320
    %v325 = vsub.f32 %v317, %v323
    %v326 = vmul.f32 %v324, 1.442695
    %v327 = vpow.pop %v326
    %v328 = vmul.f32 %v325, 1.442695
    %v329 = vpow.pop %v328
    %v330 = vsel %vm164, %v327, 0.0
    %331 = vadd.xlane.f32.xlu0 %v330
    %v332 = vpop.xlane.xlu0 %331
    %v333 = vsel %vm164, %v329, 0.0
    %334 = vadd.xlane.f32.xlu0 %v333
    %v335 = vpop.xlane.xlu0 %334
    %v336 = vrcp.pop %v332
    %v337 = vrcp.pop %v335
    %v338 = vmul.f32 %v327, %v336
    %v339 = vmul.f32 %v329, %v337
    %340 = vrot.lane.b32.xlu0 %v149, 64
    %v341 = vpop.permute.xlu0 %340
    %v344 = vsel %vm164, %v338, 0
    %346 = vmatprep.subr.mxu0 0.0
    %347 = vmatpush1.msra.mxu0 0.0
    %348 = vmatprep.subr.mxu0 0.0
    %349 = vmatpush1.msra.mxu0 0.0
    %350 = vmatprep.subr.mxu0 0.0
    %351 = vmatpush1.msra.mxu0 0.0
    %352 = vmatprep.subr.mxu0 0.0
    %353 = vmatpush1.msra.mxu0 0.0
    %354 = vmatprep.subr.mxu0 0.0
    %355 = vmatpush1.msra.mxu0 0.0
    %356 = vmatprep.subr.mxu0 0.0
    %357 = vmatpush1.msra.mxu0 0.0
    %358 = vmatprep.subr.mxu0 0.0
    %359 = vmatpush1.msra.mxu0 0.0
    %360 = vmatprep.subr.mxu0 0.0
    %361 = vmatpush1.msra.mxu0 0.0
    %362 = vmatprep.subr.mxu0 0.0
    %363 = vmatpush1.msra.mxu0 0.0
    %364 = vmatprep.subr.mxu0 0.0
    %365 = vmatpush1.msra.mxu0 0.0
    %366 = vmatprep.subr.mxu0 0.0
    %367 = vmatpush1.msra.mxu0 0.0
    %368 = vmatprep.subr.mxu0 0.0
    %369 = vmatpush1.msra.mxu0 0.0
    %370 = vmatprep.subr.mxu0 0.0
    %371 = vmatpush1.msra.mxu0 0.0
    %372 = vmatprep.subr.mxu0 0.0
    %373 = vmatpush1.msra.mxu0 0.0
    %374 = vmatprep.subr.mxu0 0.0
    %375 = vmatpush1.msra.mxu0 0.0
    %376 = vmatprep.subr.mxu0 0.0
    %377 = vmatpush1.msra.mxu0 %v341
    %378 = vmatprep.subr.mxu0 0.0
    %379 = vmatpush2.msra.mxu0 0.0
    %380 = vmatprep.subr.mxu0 0.0
    %381 = vmatpush2.msra.mxu0 0.0
    %382 = vmatprep.subr.mxu0 0.0
    %383 = vmatpush2.msra.mxu0 0.0
    %384 = vmatprep.subr.mxu0 0.0
    %385 = vmatpush2.msra.mxu0 0.0
    %386 = vmatprep.subr.mxu0 0.0
    %387 = vmatpush2.msra.mxu0 0.0
    %388 = vmatprep.subr.mxu0 0.0
    %389 = vmatpush2.msra.mxu0 0.0
    %390 = vmatprep.subr.mxu0 0.0
    %391 = vmatpush2.msra.mxu0 0.0
    %392 = vmatprep.subr.mxu0 0.0
    %393 = vmatpush2.msra.mxu0 0.0
    %394 = vmatprep.subr.mxu0 0.0
    %395 = vmatpush2.msra.mxu0 0.0
    %396 = vmatprep.subr.mxu0 0.0
    %397 = vmatpush2.msra.mxu0 0.0
    %398 = vmatprep.subr.mxu0 0.0
    %399 = vmatpush2.msra.mxu0 0.0
    %400 = vmatprep.subr.mxu0 0.0
    %401 = vmatpush2.msra.mxu0 0.0
    %402 = vmatprep.subr.mxu0 0.0
    %403 = vmatpush2.msra.mxu0 0.0
    %404 = vmatprep.subr.mxu0 0.0
    %405 = vmatpush2.msra.mxu0 0.0
    %406 = vmatprep.subr.mxu0 0.0
    %407 = vmatpush2.msra.mxu0 0.0
    %408 = vmatprep.subr.mxu0 0.0
    %409 = vmatpush2.msra.mxu0 0.0
    %410 = vmatprep.mubr.f32.mxu0 0.0
    %411 = vmatmul.mubr.f32.gmra.mxu0 %v344
    %v412 = vpop.f32.mrf.mxu0
    %v413 = vadd.f32 0.0, %v412
    %v414 = vpop.f32.mrf.mxu0
    %415 = vdwg.mxu0
    %416 = vrot.lane.b32.xlu0 %v154, 64
    %v417 = vpop.permute.xlu0 %416
    %v420 = vsel %vm164, %v339, 0
    %422 = vmatprep.subr.mxu0 0.0
    %423 = vmatpush1.msra.mxu0 0.0
    %424 = vmatprep.subr.mxu0 0.0
    %425 = vmatpush1.msra.mxu0 0.0
    %426 = vmatprep.subr.mxu0 0.0
    %427 = vmatpush1.msra.mxu0 0.0
    %428 = vmatprep.subr.mxu0 0.0
    %429 = vmatpush1.msra.mxu0 0.0
    %430 = vmatprep.subr.mxu0 0.0
    %431 = vmatpush1.msra.mxu0 0.0
    %432 = vmatprep.subr.mxu0 0.0
    %433 = vmatpush1.msra.mxu0 0.0
    %434 = vmatprep.subr.mxu0 0.0
    %435 = vmatpush1.msra.mxu0 0.0
    %436 = vmatprep.subr.mxu0 0.0
    %437 = vmatpush1.msra.mxu0 0.0
    %438 = vmatprep.subr.mxu0 0.0
    %439 = vmatpush1.msra.mxu0 0.0
    %440 = vmatprep.subr.mxu0 0.0
    %441 = vmatpush1.msra.mxu0 0.0
    %442 = vmatprep.subr.mxu0 0.0
    %443 = vmatpush1.msra.mxu0 0.0
    %444 = vmatprep.subr.mxu0 0.0
    %445 = vmatpush1.msra.mxu0 0.0
    %446 = vmatprep.subr.mxu0 0.0
    %447 = vmatpush1.msra.mxu0 0.0
    %448 = vmatprep.subr.mxu0 0.0
    %449 = vmatpush1.msra.mxu0 0.0
    %450 = vmatprep.subr.mxu0 0.0
    %451 = vmatpush1.msra.mxu0 0.0
    %452 = vmatprep.subr.mxu0 0.0
    %453 = vmatpush1.msra.mxu0 %v417
    %454 = vmatprep.subr.mxu0 0.0
    %455 = vmatpush2.msra.mxu0 0.0
    %456 = vmatprep.subr.mxu0 0.0
    %457 = vmatpush2.msra.mxu0 0.0
    %458 = vmatprep.subr.mxu0 0.0
    %459 = vmatpush2.msra.mxu0 0.0
    %460 = vmatprep.subr.mxu0 0.0
    %461 = vmatpush2.msra.mxu0 0.0
    %462 = vmatprep.subr.mxu0 0.0
    %463 = vmatpush2.msra.mxu0 0.0
    %464 = vmatprep.subr.mxu0 0.0
    %465 = vmatpush2.msra.mxu0 0.0
    %466 = vmatprep.subr.mxu0 0.0
    %467 = vmatpush2.msra.mxu0 0.0
    %468 = vmatprep.subr.mxu0 0.0
    %469 = vmatpush2.msra.mxu0 0.0
    %470 = vmatprep.subr.mxu0 0.0
    %471 = vmatpush2.msra.mxu0 0.0
    %472 = vmatprep.subr.mxu0 0.0
    %473 = vmatpush2.msra.mxu0 0.0
    %474 = vmatprep.subr.mxu0 0.0
    %475 = vmatpush2.msra.mxu0 0.0
    %476 = vmatprep.subr.mxu0 0.0
    %477 = vmatpush2.msra.mxu0 0.0
    %478 = vmatprep.subr.mxu0 0.0
    %479 = vmatpush2.msra.mxu0 0.0
    %480 = vmatprep.subr.mxu0 0.0
    %481 = vmatpush2.msra.mxu0 0.0
    %482 = vmatprep.subr.mxu0 0.0
    %483 = vmatpush2.msra.mxu0 0.0
    %484 = vmatprep.subr.mxu0 0.0
    %485 = vmatpush2.msra.mxu0 0.0
    %486 = vmatprep.mubr.f32.mxu0 0.0
    %487 = vmatmul.mubr.f32.gmra.mxu0 %v420
    %v488 = vpop.f32.mrf.mxu0
    %v489 = vadd.f32 0.0, %v488
    %v490 = vpop.f32.mrf.mxu0
    %491 = vdwg.mxu0
    %492 = vrot.lane.b32.xlu0 %v149, 120
    %v493 = vpop.permute.xlu0 %492
    %494 = vrot.lane.b32.xlu0 %v149, 88
    %v495 = vpop.permute.xlu0 %494
    %v496 = vsel %vm164, %v493, 0
    %v498 = vsel %vm164, %v495, 0
    %500 = vmatprep.subr.mxu0 0.0
    %501 = vmatpush1.xpose.msra.mxu0 0.0
    %502 = vmatprep.subr.mxu0 0.0
    %503 = vmatpush1.xpose.msra.mxu0 0.0
    %504 = vmatprep.subr.mxu0 0.0
    %505 = vmatpush1.xpose.msra.mxu0 0.0
    %506 = vmatprep.subr.mxu0 0.0
    %507 = vmatpush1.xpose.msra.mxu0 0.0
    %508 = vmatprep.subr.mxu0 0.0
    %509 = vmatpush1.xpose.msra.mxu0 0.0
    %510 = vmatprep.subr.mxu0 0.0
    %511 = vmatpush1.xpose.msra.mxu0 0.0
    %512 = vmatprep.subr.mxu0 0.0
    %513 = vmatpush1.xpose.msra.mxu0 0.0
    %514 = vmatprep.subr.mxu0 0.0
    %515 = vmatpush1.xpose.msra.mxu0 0.0
    %516 = vmatprep.subr.mxu0 0.0
    %517 = vmatpush1.xpose.msra.mxu0 0.0
    %518 = vmatprep.subr.mxu0 0.0
    %519 = vmatpush1.xpose.msra.mxu0 0.0
    %520 = vmatprep.subr.mxu0 0.0
    %521 = vmatpush1.xpose.msra.mxu0 0.0
    %522 = vmatprep.subr.mxu0 0.0
    %523 = vmatpush1.xpose.msra.mxu0 0.0
    %524 = vmatprep.subr.mxu0 0.0
    %525 = vmatpush1.xpose.msra.mxu0 0.0
    %526 = vmatprep.subr.mxu0 0.0
    %527 = vmatpush1.xpose.msra.mxu0 0.0
    %528 = vmatprep.subr.mxu0 0.0
    %529 = vmatpush1.xpose.msra.mxu0 0.0
    %530 = vmatprep.subr.mxu0 0.0
    %531 = vmatpush1.xpose.msra.mxu0 %v498
    %532 = vmatprep.subr.mxu0 0.0
    %533 = vmatpush2.xpose.msra.mxu0 0.0
    %534 = vmatprep.subr.mxu0 0.0
    %535 = vmatpush2.xpose.msra.mxu0 0.0
    %536 = vmatprep.subr.mxu0 0.0
    %537 = vmatpush2.xpose.msra.mxu0 0.0
    %538 = vmatprep.subr.mxu0 0.0
    %539 = vmatpush2.xpose.msra.mxu0 0.0
    %540 = vmatprep.subr.mxu0 0.0
    %541 = vmatpush2.xpose.msra.mxu0 0.0
    %542 = vmatprep.subr.mxu0 0.0
    %543 = vmatpush2.xpose.msra.mxu0 0.0
    %544 = vmatprep.subr.mxu0 0.0
    %545 = vmatpush2.xpose.msra.mxu0 0.0
    %546 = vmatprep.subr.mxu0 0.0
    %547 = vmatpush2.xpose.msra.mxu0 0.0
    %548 = vmatprep.subr.mxu0 0.0
    %549 = vmatpush2.xpose.msra.mxu0 0.0
    %550 = vmatprep.subr.mxu0 0.0
    %551 = vmatpush2.xpose.msra.mxu0 0.0
    %552 = vmatprep.subr.mxu0 0.0
    %553 = vmatpush2.xpose.msra.mxu0 0.0
    %554 = vmatprep.subr.mxu0 0.0
    %555 = vmatpush2.xpose.msra.mxu0 0.0
    %556 = vmatprep.subr.mxu0 0.0
    %557 = vmatpush2.xpose.msra.mxu0 0.0
    %558 = vmatprep.subr.mxu0 0.0
    %559 = vmatpush2.xpose.msra.mxu0 0.0
    %560 = vmatprep.subr.mxu0 0.0
    %561 = vmatpush2.xpose.msra.mxu0 0.0
    %562 = vmatprep.subr.mxu0 0.0
    %563 = vmatpush2.xpose.msra.mxu0 0.0
    %564 = vmatprep.mubr.f32.mxu0 0.0
    %565 = vmatmul.mubr.f32.gmra.mxu0 %v496
    %v566 = vpop.f32.mrf.mxu0
    %v567 = vadd.f32 0.0, %v566
    %v568 = vpop.f32.mrf.mxu0
    %569 = vdwg.mxu0
    %570 = vrot.lane.b32.xlu0 %v154, 120
    %v571 = vpop.permute.xlu0 %570
    %572 = vrot.lane.b32.xlu0 %v154, 88
    %v573 = vpop.permute.xlu0 %572
    %v574 = vsel %vm164, %v571, 0
    %v576 = vsel %vm164, %v573, 0
    %578 = vmatprep.subr.mxu0 0.0
    %579 = vmatpush1.xpose.msra.mxu0 0.0
    %580 = vmatprep.subr.mxu0 0.0
    %581 = vmatpush1.xpose.msra.mxu0 0.0
    %582 = vmatprep.subr.mxu0 0.0
    %583 = vmatpush1.xpose.msra.mxu0 0.0
    %584 = vmatprep.subr.mxu0 0.0
    %585 = vmatpush1.xpose.msra.mxu0 0.0
    %586 = vmatprep.subr.mxu0 0.0
    %587 = vmatpush1.xpose.msra.mxu0 0.0
    %588 = vmatprep.subr.mxu0 0.0
    %589 = vmatpush1.xpose.msra.mxu0 0.0
    %590 = vmatprep.subr.mxu0 0.0
    %591 = vmatpush1.xpose.msra.mxu0 0.0
    %592 = vmatprep.subr.mxu0 0.0
    %593 = vmatpush1.xpose.msra.mxu0 0.0
    %594 = vmatprep.subr.mxu0 0.0
    %595 = vmatpush1.xpose.msra.mxu0 0.0
    %596 = vmatprep.subr.mxu0 0.0
    %597 = vmatpush1.xpose.msra.mxu0 0.0
    %598 = vmatprep.subr.mxu0 0.0
    %599 = vmatpush1.xpose.msra.mxu0 0.0
    %600 = vmatprep.subr.mxu0 0.0
    %601 = vmatpush1.xpose.msra.mxu0 0.0
    %602 = vmatprep.subr.mxu0 0.0
    %603 = vmatpush1.xpose.msra.mxu0 0.0
    %604 = vmatprep.subr.mxu0 0.0
    %605 = vmatpush1.xpose.msra.mxu0 0.0
    %606 = vmatprep.subr.mxu0 0.0
    %607 = vmatpush1.xpose.msra.mxu0 0.0
    %608 = vmatprep.subr.mxu0 0.0
    %609 = vmatpush1.xpose.msra.mxu0 %v576
    %610 = vmatprep.subr.mxu0 0.0
    %611 = vmatpush2.xpose.msra.mxu0 0.0
    %612 = vmatprep.subr.mxu0 0.0
    %613 = vmatpush2.xpose.msra.mxu0 0.0
    %614 = vmatprep.subr.mxu0 0.0
    %615 = vmatpush2.xpose.msra.mxu0 0.0
    %616 = vmatprep.subr.mxu0 0.0
    %617 = vmatpush2.xpose.msra.mxu0 0.0
    %618 = vmatprep.subr.mxu0 0.0
    %619 = vmatpush2.xpose.msra.mxu0 0.0
    %620 = vmatprep.subr.mxu0 0.0
    %621 = vmatpush2.xpose.msra.mxu0 0.0
    %622 = vmatprep.subr.mxu0 0.0
    %623 = vmatpush2.xpose.msra.mxu0 0.0
    %624 = vmatprep.subr.mxu0 0.0
    %625 = vmatpush2.xpose.msra.mxu0 0.0
    %626 = vmatprep.subr.mxu0 0.0
    %627 = vmatpush2.xpose.msra.mxu0 0.0
    %628 = vmatprep.subr.mxu0 0.0
    %629 = vmatpush2.xpose.msra.mxu0 0.0
    %630 = vmatprep.subr.mxu0 0.0
    %631 = vmatpush2.xpose.msra.mxu0 0.0
    %632 = vmatprep.subr.mxu0 0.0
    %633 = vmatpush2.xpose.msra.mxu0 0.0
    %634 = vmatprep.subr.mxu0 0.0
    %635 = vmatpush2.xpose.msra.mxu0 0.0
    %636 = vmatprep.subr.mxu0 0.0
    %637 = vmatpush2.xpose.msra.mxu0 0.0
    %638 = vmatprep.subr.mxu0 0.0
    %639 = vmatpush2.xpose.msra.mxu0 0.0
    %640 = vmatprep.subr.mxu0 0.0
    %641 = vmatpush2.xpose.msra.mxu0 0.0
    %642 = vmatprep.mubr.f32.mxu0 0.0
    %643 = vmatmul.mubr.f32.gmra.mxu0 %v574
    %v644 = vpop.f32.mrf.mxu0
    %v645 = vadd.f32 0.0, %v644
    %v646 = vpop.f32.mrf.mxu0
    %647 = vdwg.mxu0
    %v648 = vmul.f32 %v567, 0.35355338
    %v649 = vmul.f32 %v645, 0.35355338
    %v650 = vsel %vm164, %v648, -inf
    %651 = vmax.xlane.f32.xlu0 %v650
    %v652 = vpop.xlane.xlu0 %651
    %v653 = vsel %vm164, %v649, -inf
    %654 = vmax.xlane.f32.xlu0 %v653
    %v655 = vpop.xlane.xlu0 %654
    %v656 = vsub.f32 %v648, %v652
    %v657 = vsub.f32 %v649, %v655
    %v658 = vmul.f32 %v656, 1.442695
    %v659 = vpow.pop %v658
    %v660 = vmul.f32 %v657, 1.442695
    %v661 = vpow.pop %v660
    %v662 = vsel %vm164, %v659, 0.0
    %663 = vadd.xlane.f32.xlu0 %v662
    %v664 = vpop.xlane.xlu0 %663
    %v665 = vsel %vm164, %v661, 0.0
    %666 = vadd.xlane.f32.xlu0 %v665
    %v667 = vpop.xlane.xlu0 %666
    %v668 = vrcp.pop %v664
    %v669 = vrcp.pop %v667
    %v670 = vmul.f32 %v659, %v668
    %v671 = vmul.f32 %v661, %v669
    %672 = vrot.lane.b32.xlu0 %v149, 56
    %v673 = vpop.permute.xlu0 %672
    %v676 = vsel %vm164, %v670, 0
    %678 = vmatprep.subr.mxu0 0.0
    %679 = vmatpush1.msra.mxu0 0.0
    %680 = vmatprep.subr.mxu0 0.0
    %681 = vmatpush1.msra.mxu0 0.0
    %682 = vmatprep.subr.mxu0 0.0
    %683 = vmatpush1.msra.mxu0 0.0
    %684 = vmatprep.subr.mxu0 0.0
    %685 = vmatpush1.msra.mxu0 0.0
    %686 = vmatprep.subr.mxu0 0.0
    %687 = vmatpush1.msra.mxu0 0.0
    %688 = vmatprep.subr.mxu0 0.0
    %689 = vmatpush1.msra.mxu0 0.0
    %690 = vmatprep.subr.mxu0 0.0
    %691 = vmatpush1.msra.mxu0 0.0
    %692 = vmatprep.subr.mxu0 0.0
    %693 = vmatpush1.msra.mxu0 0.0
    %694 = vmatprep.subr.mxu0 0.0
    %695 = vmatpush1.msra.mxu0 0.0
    %696 = vmatprep.subr.mxu0 0.0
    %697 = vmatpush1.msra.mxu0 0.0
    %698 = vmatprep.subr.mxu0 0.0
    %699 = vmatpush1.msra.mxu0 0.0
    %700 = vmatprep.subr.mxu0 0.0
    %701 = vmatpush1.msra.mxu0 0.0
    %702 = vmatprep.subr.mxu0 0.0
    %703 = vmatpush1.msra.mxu0 0.0
    %704 = vmatprep.subr.mxu0 0.0
    %705 = vmatpush1.msra.mxu0 0.0
    %706 = vmatprep.subr.mxu0 0.0
    %707 = vmatpush1.msra.mxu0 0.0
    %708 = vmatprep.subr.mxu0 0.0
    %709 = vmatpush1.msra.mxu0 %v673
    %710 = vmatprep.subr.mxu0 0.0
    %711 = vmatpush2.msra.mxu0 0.0
    %712 = vmatprep.subr.mxu0 0.0
    %713 = vmatpush2.msra.mxu0 0.0
    %714 = vmatprep.subr.mxu0 0.0
    %715 = vmatpush2.msra.mxu0 0.0
    %716 = vmatprep.subr.mxu0 0.0
    %717 = vmatpush2.msra.mxu0 0.0
    %718 = vmatprep.subr.mxu0 0.0
    %719 = vmatpush2.msra.mxu0 0.0
    %720 = vmatprep.subr.mxu0 0.0
    %721 = vmatpush2.msra.mxu0 0.0
    %722 = vmatprep.subr.mxu0 0.0
    %723 = vmatpush2.msra.mxu0 0.0
    %724 = vmatprep.subr.mxu0 0.0
    %725 = vmatpush2.msra.mxu0 0.0
    %726 = vmatprep.subr.mxu0 0.0
    %727 = vmatpush2.msra.mxu0 0.0
    %728 = vmatprep.subr.mxu0 0.0
    %729 = vmatpush2.msra.mxu0 0.0
    %730 = vmatprep.subr.mxu0 0.0
    %731 = vmatpush2.msra.mxu0 0.0
    %732 = vmatprep.subr.mxu0 0.0
    %733 = vmatpush2.msra.mxu0 0.0
    %734 = vmatprep.subr.mxu0 0.0
    %735 = vmatpush2.msra.mxu0 0.0
    %736 = vmatprep.subr.mxu0 0.0
    %737 = vmatpush2.msra.mxu0 0.0
    %738 = vmatprep.subr.mxu0 0.0
    %739 = vmatpush2.msra.mxu0 0.0
    %740 = vmatprep.subr.mxu0 0.0
    %741 = vmatpush2.msra.mxu0 0.0
    %742 = vmatprep.mubr.f32.mxu0 0.0
    %743 = vmatmul.mubr.f32.gmra.mxu0 %v676
    %v744 = vpop.f32.mrf.mxu0
    %v745 = vadd.f32 0.0, %v744
    %v746 = vpop.f32.mrf.mxu0
    %747 = vdwg.mxu0
    %748 = vrot.lane.b32.xlu0 %v154, 56
    %v749 = vpop.permute.xlu0 %748
    %v752 = vsel %vm164, %v671, 0
    %754 = vmatprep.subr.mxu0 0.0
    %755 = vmatpush1.msra.mxu0 0.0
    %756 = vmatprep.subr.mxu0 0.0
    %757 = vmatpush1.msra.mxu0 0.0
    %758 = vmatprep.subr.mxu0 0.0
    %759 = vmatpush1.msra.mxu0 0.0
    %760 = vmatprep.subr.mxu0 0.0
    %761 = vmatpush1.msra.mxu0 0.0
    %762 = vmatprep.subr.mxu0 0.0
    %763 = vmatpush1.msra.mxu0 0.0
    %764 = vmatprep.subr.mxu0 0.0
    %765 = vmatpush1.msra.mxu0 0.0
    %766 = vmatprep.subr.mxu0 0.0
    %767 = vmatpush1.msra.mxu0 0.0
    %768 = vmatprep.subr.mxu0 0.0
    %769 = vmatpush1.msra.mxu0 0.0
    %770 = vmatprep.subr.mxu0 0.0
    %771 = vmatpush1.msra.mxu0 0.0
    %772 = vmatprep.subr.mxu0 0.0
    %773 = vmatpush1.msra.mxu0 0.0
    %774 = vmatprep.subr.mxu0 0.0
    %775 = vmatpush1.msra.mxu0 0.0
    %776 = vmatprep.subr.mxu0 0.0
    %777 = vmatpush1.msra.mxu0 0.0
    %778 = vmatprep.subr.mxu0 0.0
    %779 = vmatpush1.msra.mxu0 0.0
    %780 = vmatprep.subr.mxu0 0.0
    %781 = vmatpush1.msra.mxu0 0.0
    %782 = vmatprep.subr.mxu0 0.0
    %783 = vmatpush1.msra.mxu0 0.0
    %784 = vmatprep.subr.mxu0 0.0
    %785 = vmatpush1.msra.mxu0 %v749
    %786 = vmatprep.subr.mxu0 0.0
    %787 = vmatpush2.msra.mxu0 0.0
    %788 = vmatprep.subr.mxu0 0.0
    %789 = vmatpush2.msra.mxu0 0.0
    %790 = vmatprep.subr.mxu0 0.0
    %791 = vmatpush2.msra.mxu0 0.0
    %792 = vmatprep.subr.mxu0 0.0
    %793 = vmatpush2.msra.mxu0 0.0
    %794 = vmatprep.subr.mxu0 0.0
    %795 = vmatpush2.msra.mxu0 0.0
    %796 = vmatprep.subr.mxu0 0.0
    %797 = vmatpush2.msra.mxu0 0.0
    %798 = vmatprep.subr.mxu0 0.0
    %799 = vmatpush2.msra.mxu0 0.0
    %800 = vmatprep.subr.mxu0 0.0
    %801 = vmatpush2.msra.mxu0 0.0
    %802 = vmatprep.subr.mxu0 0.0
    %803 = vmatpush2.msra.mxu0 0.0
    %804 = vmatprep.subr.mxu0 0.0
    %805 = vmatpush2.msra.mxu0 0.0
    %806 = vmatprep.subr.mxu0 0.0
    %807 = vmatpush2.msra.mxu0 0.0
    %808 = vmatprep.subr.mxu0 0.0
    %809 = vmatpush2.msra.mxu0 0.0
    %810 = vmatprep.subr.mxu0 0.0
    %811 = vmatpush2.msra.mxu0 0.0
    %812 = vmatprep.subr.mxu0 0.0
    %813 = vmatpush2.msra.mxu0 0.0
    %814 = vmatprep.subr.mxu0 0.0
    %815 = vmatpush2.msra.mxu0 0.0
    %816 = vmatprep.subr.mxu0 0.0
    %817 = vmatpush2.msra.mxu0 0.0
    %818 = vmatprep.mubr.f32.mxu0 0.0
    %819 = vmatmul.mubr.f32.gmra.mxu0 %v752
    %v820 = vpop.f32.mrf.mxu0
    %v821 = vadd.f32 0.0, %v820
    %v822 = vpop.f32.mrf.mxu0
    %823 = vdwg.mxu0
    %v825 = vsel %vm164, %v745, 0
    %v828 = vsel %vm164, %v821, 0
    %830 = vmatprep.subr.mxu0 0.0
    %831 = vmatpush1.msra.mxu0 0.0
    %832 = vmatprep.subr.mxu0 0.0
    %833 = vmatpush1.msra.mxu0 0.0
    %834 = vmatprep.subr.mxu0 0.0
    %835 = vmatpush1.msra.mxu0 0.0
    %836 = vmatprep.subr.mxu0 0.0
    %837 = vmatpush1.msra.mxu0 0.0
    %838 = vmatprep.subr.mxu0 0.0
    %839 = vmatpush1.msra.mxu0 0.0
    %840 = vmatprep.subr.mxu0 0.0
    %841 = vmatpush1.msra.mxu0 0.0
    %842 = vmatprep.subr.mxu0 0.0
    %843 = vmatpush1.msra.mxu0 0.0
    %844 = vmatprep.subr.mxu0 0.0
    %845 = vmatpush1.msra.mxu0 0.0
    %846 = vmatprep.subr.mxu0 0.0
    %847 = vmatpush1.msra.mxu0 0.0
    %848 = vmatprep.subr.mxu0 0.0
    %849 = vmatpush1.msra.mxu0 0.0
    %850 = vmatprep.subr.mxu0 0.0
    %851 = vmatpush1.msra.mxu0 0.0
    %852 = vmatprep.subr.mxu0 0.0
    %853 = vmatpush1.msra.mxu0 0.0
    %854 = vmatprep.subr.mxu0 0.0
    %855 = vmatpush1.msra.mxu0 0.0
    %856 = vmatprep.subr.mxu0 0.0
    %857 = vmatpush1.msra.mxu0 0.0
    %858 = vmatprep.subr.mxu0 0.0
    %859 = vmatpush1.msra.mxu0 0.0
    %860 = vmatprep.subr.mxu0 0.0
    %861 = vmatpush1.msra.mxu0 %v158
    %862 = vmatprep.subr.mxu0 0.0
    %863 = vmatpush2.msra.mxu0 0.0
    %864 = vmatprep.subr.mxu0 0.0
    %865 = vmatpush2.msra.mxu0 0.0
    %866 = vmatprep.subr.mxu0 0.0
    %867 = vmatpush2.msra.mxu0 0.0
    %868 = vmatprep.subr.mxu0 0.0
    %869 = vmatpush2.msra.mxu0 0.0
    %870 = vmatprep.subr.mxu0 0.0
    %871 = vmatpush2.msra.mxu0 0.0
    %872 = vmatprep.subr.mxu0 0.0
    %873 = vmatpush2.msra.mxu0 0.0
    %874 = vmatprep.subr.mxu0 0.0
    %875 = vmatpush2.msra.mxu0 0.0
    %876 = vmatprep.subr.mxu0 0.0
    %877 = vmatpush2.msra.mxu0 0.0
    %878 = vmatprep.subr.mxu0 0.0
    %879 = vmatpush2.msra.mxu0 0.0
    %880 = vmatprep.subr.mxu0 0.0
    %881 = vmatpush2.msra.mxu0 0.0
    %882 = vmatprep.subr.mxu0 0.0
    %883 = vmatpush2.msra.mxu0 0.0
    %884 = vmatprep.subr.mxu0 0.0
    %885 = vmatpush2.msra.mxu0 0.0
    %886 = vmatprep.subr.mxu0 0.0
    %887 = vmatpush2.msra.mxu0 0.0
    %888 = vmatprep.subr.mxu0 0.0
    %889 = vmatpush2.msra.mxu0 0.0
    %890 = vmatprep.subr.mxu0 0.0
    %891 = vmatpush2.msra.mxu0 0.0
    %892 = vmatprep.subr.mxu0 0.0
    %893 = vmatpush2.msra.mxu0 0.0
    %894 = vmatprep.mubr.f32.mxu0 0.0
    %895 = vmatmul.mubr.f32.gmra.mxu0 %v825
    %v896 = vpop.f32.mrf.mxu0
    %v897 = vadd.f32 0.0, %v896
    %v898 = vpop.f32.mrf.mxu0
    %899 = vmatprep.mubr.f32.mxu0 0.0
    %900 = vmatmul.mubr.f32.gmra.mxu0 %v828
    %v901 = vpop.f32.mrf.mxu0
    %v902 = vadd.f32 0.0, %v901
    %v903 = vpop.f32.mrf.mxu0
    %904 = vdwg.mxu0
    %v906 = vsel %vm164, %v413, 0
    %v909 = vsel %vm164, %v489, 0
    %911 = vmatprep.subr.mxu0 0.0
    %912 = vmatpush1.msra.mxu0 0.0
    %913 = vmatprep.subr.mxu0 0.0
    %914 = vmatpush1.msra.mxu0 0.0
    %915 = vmatprep.subr.mxu0 0.0
    %916 = vmatpush1.msra.mxu0 0.0
    %917 = vmatprep.subr.mxu0 0.0
    %918 = vmatpush1.msra.mxu0 0.0
    %919 = vmatprep.subr.mxu0 0.0
    %920 = vmatpush1.msra.mxu0 0.0
    %921 = vmatprep.subr.mxu0 0.0
    %922 = vmatpush1.msra.mxu0 0.0
    %923 = vmatprep.subr.mxu0 0.0
    %924 = vmatpush1.msra.mxu0 0.0
    %925 = vmatprep.subr.mxu0 0.0
    %926 = vmatpush1.msra.mxu0 0.0
    %927 = vmatprep.subr.mxu0 0.0
    %928 = vmatpush1.msra.mxu0 0.0
    %929 = vmatprep.subr.mxu0 0.0
    %930 = vmatpush1.msra.mxu0 0.0
    %931 = vmatprep.subr.mxu0 0.0
    %932 = vmatpush1.msra.mxu0 0.0
    %933 = vmatprep.subr.mxu0 0.0
    %934 = vmatpush1.msra.mxu0 0.0
    %935 = vmatprep.subr.mxu0 0.0
    %936 = vmatpush1.msra.mxu0 0.0
    %937 = vmatprep.subr.mxu0 0.0
    %938 = vmatpush1.msra.mxu0 0.0
    %939 = vmatprep.subr.mxu0 0.0
    %940 = vmatpush1.msra.mxu0 0.0
    %941 = vmatprep.subr.mxu0 0.0
    %942 = vmatpush1.msra.mxu0 %v157
    %943 = vmatprep.subr.mxu0 0.0
    %944 = vmatpush2.msra.mxu0 0.0
    %945 = vmatprep.subr.mxu0 0.0
    %946 = vmatpush2.msra.mxu0 0.0
    %947 = vmatprep.subr.mxu0 0.0
    %948 = vmatpush2.msra.mxu0 0.0
    %949 = vmatprep.subr.mxu0 0.0
    %950 = vmatpush2.msra.mxu0 0.0
    %951 = vmatprep.subr.mxu0 0.0
    %952 = vmatpush2.msra.mxu0 0.0
    %953 = vmatprep.subr.mxu0 0.0
    %954 = vmatpush2.msra.mxu0 0.0
    %955 = vmatprep.subr.mxu0 0.0
    %956 = vmatpush2.msra.mxu0 0.0
    %957 = vmatprep.subr.mxu0 0.0
    %958 = vmatpush2.msra.mxu0 0.0
    %959 = vmatprep.subr.mxu0 0.0
    %960 = vmatpush2.msra.mxu0 0.0
    %961 = vmatprep.subr.mxu0 0.0
    %962 = vmatpush2.msra.mxu0 0.0
    %963 = vmatprep.subr.mxu0 0.0
    %964 = vmatpush2.msra.mxu0 0.0
    %965 = vmatprep.subr.mxu0 0.0
    %966 = vmatpush2.msra.mxu0 0.0
    %967 = vmatprep.subr.mxu0 0.0
    %968 = vmatpush2.msra.mxu0 0.0
    %969 = vmatprep.subr.mxu0 0.0
    %970 = vmatpush2.msra.mxu0 0.0
    %971 = vmatprep.subr.mxu0 0.0
    %972 = vmatpush2.msra.mxu0 0.0
    %973 = vmatprep.subr.mxu0 0.0
    %974 = vmatpush2.msra.mxu0 0.0
    %975 = vmatprep.mubr.f32.mxu0 0.0
    %976 = vmatmul.mubr.f32.gmra.mxu0 %v906
    %v977 = vpop.f32.mrf.mxu0
    %v978 = vadd.f32 %v897, %v977
    %v979 = vpop.f32.mrf.mxu0
    %980 = vmatprep.mubr.f32.mxu0 0.0
    %981 = vmatmul.mubr.f32.gmra.mxu0 %v909
    %v982 = vpop.f32.mrf.mxu0
    %v983 = vadd.f32 %v902, %v982
    %v984 = vpop.f32.mrf.mxu0
    %985 = vdwg.mxu0
    %986 = vrot.lane.b32.xlu0 %v149, 112
    %v987 = vpop.permute.xlu0 %986
    %988 = vrot.lane.b32.xlu0 %v149, 80
    %v989 = vpop.permute.xlu0 %988
    %v990 = vsel %vm164, %v987, 0
    %v992 = vsel %vm164, %v989, 0
    %994 = vmatprep.subr.mxu0 0.0
    %995 = vmatpush1.xpose.msra.mxu0 0.0
    %996 = vmatprep.subr.mxu0 0.0
    %997 = vmatpush1.xpose.msra.mxu0 0.0
    %998 = vmatprep.subr.mxu0 0.0
    %999 = vmatpush1.xpose.msra.mxu0 0.0
    %1000 = vmatprep.subr.mxu0 0.0
    %1001 = vmatpush1.xpose.msra.mxu0 0.0
    %1002 = vmatprep.subr.mxu0 0.0
    %1003 = vmatpush1.xpose.msra.mxu0 0.0
    %1004 = vmatprep.subr.mxu0 0.0
    %1005 = vmatpush1.xpose.msra.mxu0 0.0
    %1006 = vmatprep.subr.mxu0 0.0
    %1007 = vmatpush1.xpose.msra.mxu0 0.0
    %1008 = vmatprep.subr.mxu0 0.0
    %1009 = vmatpush1.xpose.msra.mxu0 0.0
    %1010 = vmatprep.subr.mxu0 0.0
    %1011 = vmatpush1.xpose.msra.mxu0 0.0
    %1012 = vmatprep.subr.mxu0 0.0
    %1013 = vmatpush1.xpose.msra.mxu0 0.0
    %1014 = vmatprep.subr.mxu0 0.0
    %1015 = vmatpush1.xpose.msra.mxu0 0.0
    %1016 = vmatprep.subr.mxu0 0.0
    %1017 = vmatpush1.xpose.msra.mxu0 0.0
    %1018 = vmatprep.subr.mxu0 0.0
    %1019 = vmatpush1.xpose.msra.mxu0 0.0
    %1020 = vmatprep.subr.mxu0 0.0
    %1021 = vmatpush1.xpose.msra.mxu0 0.0
    %1022 = vmatprep.subr.mxu0 0.0
    %1023 = vmatpush1.xpose.msra.mxu0 0.0
    %1024 = vmatprep.subr.mxu0 0.0
    %1025 = vmatpush1.xpose.msra.mxu0 %v992
    %1026 = vmatprep.subr.mxu0 0.0
    %1027 = vmatpush2.xpose.msra.mxu0 0.0
    %1028 = vmatprep.subr.mxu0 0.0
    %1029 = vmatpush2.xpose.msra.mxu0 0.0
    %1030 = vmatprep.subr.mxu0 0.0
    %1031 = vmatpush2.xpose.msra.mxu0 0.0
    %1032 = vmatprep.subr.mxu0 0.0
    %1033 = vmatpush2.xpose.msra.mxu0 0.0
    %1034 = vmatprep.subr.mxu0 0.0
    %1035 = vmatpush2.xpose.msra.mxu0 0.0
    %1036 = vmatprep.subr.mxu0 0.0
    %1037 = vmatpush2.xpose.msra.mxu0 0.0
    %1038 = vmatprep.subr.mxu0 0.0
    %1039 = vmatpush2.xpose.msra.mxu0 0.0
    %1040 = vmatprep.subr.mxu0 0.0
    %1041 = vmatpush2.xpose.msra.mxu0 0.0
    %1042 = vmatprep.subr.mxu0 0.0
    %1043 = vmatpush2.xpose.msra.mxu0 0.0
    %1044 = vmatprep.subr.mxu0 0.0
    %1045 = vmatpush2.xpose.msra.mxu0 0.0
    %1046 = vmatprep.subr.mxu0 0.0
    %1047 = vmatpush2.xpose.msra.mxu0 0.0
    %1048 = vmatprep.subr.mxu0 0.0
    %1049 = vmatpush2.xpose.msra.mxu0 0.0
    %1050 = vmatprep.subr.mxu0 0.0
    %1051 = vmatpush2.xpose.msra.mxu0 0.0
    %1052 = vmatprep.subr.mxu0 0.0
    %1053 = vmatpush2.xpose.msra.mxu0 0.0
    %1054 = vmatprep.subr.mxu0 0.0
    %1055 = vmatpush2.xpose.msra.mxu0 0.0
    %1056 = vmatprep.subr.mxu0 0.0
    %1057 = vmatpush2.xpose.msra.mxu0 0.0
    %1058 = vmatprep.mubr.f32.mxu0 0.0
    %1059 = vmatmul.mubr.f32.gmra.mxu0 %v990
    %v1060 = vpop.f32.mrf.mxu0
    %v1061 = vadd.f32 0.0, %v1060
    %v1062 = vpop.f32.mrf.mxu0
    %1063 = vdwg.mxu0
    %1064 = vrot.lane.b32.xlu0 %v154, 112
    %v1065 = vpop.permute.xlu0 %1064
    %1066 = vrot.lane.b32.xlu0 %v154, 80
    %v1067 = vpop.permute.xlu0 %1066
    %v1068 = vsel %vm164, %v1065, 0
    %v1070 = vsel %vm164, %v1067, 0
    %1072 = vmatprep.subr.mxu0 0.0
    %1073 = vmatpush1.xpose.msra.mxu0 0.0
    %1074 = vmatprep.subr.mxu0 0.0
    %1075 = vmatpush1.xpose.msra.mxu0 0.0
    %1076 = vmatprep.subr.mxu0 0.0
    %1077 = vmatpush1.xpose.msra.mxu0 0.0
    %1078 = vmatprep.subr.mxu0 0.0
    %1079 = vmatpush1.xpose.msra.mxu0 0.0
    %1080 = vmatprep.subr.mxu0 0.0
    %1081 = vmatpush1.xpose.msra.mxu0 0.0
    %1082 = vmatprep.subr.mxu0 0.0
    %1083 = vmatpush1.xpose.msra.mxu0 0.0
    %1084 = vmatprep.subr.mxu0 0.0
    %1085 = vmatpush1.xpose.msra.mxu0 0.0
    %1086 = vmatprep.subr.mxu0 0.0
    %1087 = vmatpush1.xpose.msra.mxu0 0.0
    %1088 = vmatprep.subr.mxu0 0.0
    %1089 = vmatpush1.xpose.msra.mxu0 0.0
    %1090 = vmatprep.subr.mxu0 0.0
    %1091 = vmatpush1.xpose.msra.mxu0 0.0
    %1092 = vmatprep.subr.mxu0 0.0
    %1093 = vmatpush1.xpose.msra.mxu0 0.0
    %1094 = vmatprep.subr.mxu0 0.0
    %1095 = vmatpush1.xpose.msra.mxu0 0.0
    %1096 = vmatprep.subr.mxu0 0.0
    %1097 = vmatpush1.xpose.msra.mxu0 0.0
    %1098 = vmatprep.subr.mxu0 0.0
    %1099 = vmatpush1.xpose.msra.mxu0 0.0
    %1100 = vmatprep.subr.mxu0 0.0
    %1101 = vmatpush1.xpose.msra.mxu0 0.0
    %1102 = vmatprep.subr.mxu0 0.0
    %1103 = vmatpush1.xpose.msra.mxu0 %v1070
    %1104 = vmatprep.subr.mxu0 0.0
    %1105 = vmatpush2.xpose.msra.mxu0 0.0
    %1106 = vmatprep.subr.mxu0 0.0
    %1107 = vmatpush2.xpose.msra.mxu0 0.0
    %1108 = vmatprep.subr.mxu0 0.0
    %1109 = vmatpush2.xpose.msra.mxu0 0.0
    %1110 = vmatprep.subr.mxu0 0.0
    %1111 = vmatpush2.xpose.msra.mxu0 0.0
    %1112 = vmatprep.subr.mxu0 0.0
    %1113 = vmatpush2.xpose.msra.mxu0 0.0
    %1114 = vmatprep.subr.mxu0 0.0
    %1115 = vmatpush2.xpose.msra.mxu0 0.0
    %1116 = vmatprep.subr.mxu0 0.0
    %1117 = vmatpush2.xpose.msra.mxu0 0.0
    %1118 = vmatprep.subr.mxu0 0.0
    %1119 = vmatpush2.xpose.msra.mxu0 0.0
    %1120 = vmatprep.subr.mxu0 0.0
    %1121 = vmatpush2.xpose.msra.mxu0 0.0
    %1122 = vmatprep.subr.mxu0 0.0
    %1123 = vmatpush2.xpose.msra.mxu0 0.0
    %1124 = vmatprep.subr.mxu0 0.0
    %1125 = vmatpush2.xpose.msra.mxu0 0.0
    %1126 = vmatprep.subr.mxu0 0.0
    %1127 = vmatpush2.xpose.msra.mxu0 0.0
    %1128 = vmatprep.subr.mxu0 0.0
    %1129 = vmatpush2.xpose.msra.mxu0 0.0
    %1130 = vmatprep.subr.mxu0 0.0
    %1131 = vmatpush2.xpose.msra.mxu0 0.0
    %1132 = vmatprep.subr.mxu0 0.0
    %1133 = vmatpush2.xpose.msra.mxu0 0.0
    %1134 = vmatprep.subr.mxu0 0.0
    %1135 = vmatpush2.xpose.msra.mxu0 0.0
    %1136 = vmatprep.mubr.f32.mxu0 0.0
    %1137 = vmatmul.mubr.f32.gmra.mxu0 %v1068
    %v1138 = vpop.f32.mrf.mxu0
    %v1139 = vadd.f32 0.0, %v1138
    %v1140 = vpop.f32.mrf.mxu0
    %1141 = vdwg.mxu0
    %v1142 = vmul.f32 %v1061, 0.35355338
    %v1143 = vmul.f32 %v1139, 0.35355338
    %v1144 = vsel %vm164, %v1142, -inf
    %1145 = vmax.xlane.f32.xlu0 %v1144
    %v1146 = vpop.xlane.xlu0 %1145
    %v1147 = vsel %vm164, %v1143, -inf
    %1148 = vmax.xlane.f32.xlu0 %v1147
    %v1149 = vpop.xlane.xlu0 %1148
    %v1150 = vsub.f32 %v1142, %v1146
    %v1151 = vsub.f32 %v1143, %v1149
    %v1152 = vmul.f32 %v1150, 1.442695
    %v1153 = vpow.pop %v1152
    %v1154 = vmul.f32 %v1151, 1.442695
    %v1155 = vpow.pop %v1154
    %v1156 = vsel %vm164, %v1153, 0.0
    %1157 = vadd.xlane.f32.xlu0 %v1156
    %v1158 = vpop.xlane.xlu0 %1157
    %v1159 = vsel %vm164, %v1155, 0.0
    %1160 = vadd.xlane.f32.xlu0 %v1159
    %v1161 = vpop.xlane.xlu0 %1160
    %v1162 = vrcp.pop %v1158
    %v1163 = vrcp.pop %v1161
    %v1164 = vmul.f32 %v1153, %v1162
    %v1165 = vmul.f32 %v1155, %v1163
    %1166 = vrot.lane.b32.xlu0 %v149, 48
    %v1167 = vpop.permute.xlu0 %1166
    %v1170 = vsel %vm164, %v1164, 0
    %1172 = vmatprep.subr.mxu0 0.0
    %1173 = vmatpush1.msra.mxu0 0.0
    %1174 = vmatprep.subr.mxu0 0.0
    %1175 = vmatpush1.msra.mxu0 0.0
    %1176 = vmatprep.subr.mxu0 0.0
    %1177 = vmatpush1.msra.mxu0 0.0
    %1178 = vmatprep.subr.mxu0 0.0
    %1179 = vmatpush1.msra.mxu0 0.0
    %1180 = vmatprep.subr.mxu0 0.0
    %1181 = vmatpush1.msra.mxu0 0.0
    %1182 = vmatprep.subr.mxu0 0.0
    %1183 = vmatpush1.msra.mxu0 0.0
    %1184 = vmatprep.subr.mxu0 0.0
    %1185 = vmatpush1.msra.mxu0 0.0
    %1186 = vmatprep.subr.mxu0 0.0
    %1187 = vmatpush1.msra.mxu0 0.0
    %1188 = vmatprep.subr.mxu0 0.0
    %1189 = vmatpush1.msra.mxu0 0.0
    %1190 = vmatprep.subr.mxu0 0.0
    %1191 = vmatpush1.msra.mxu0 0.0
    %1192 = vmatprep.subr.mxu0 0.0
    %1193 = vmatpush1.msra.mxu0 0.0
    %1194 = vmatprep.subr.mxu0 0.0
    %1195 = vmatpush1.msra.mxu0 0.0
    %1196 = vmatprep.subr.mxu0 0.0
    %1197 = vmatpush1.msra.mxu0 0.0
    %1198 = vmatprep.subr.mxu0 0.0
    %1199 = vmatpush1.msra.mxu0 0.0
    %1200 = vmatprep.subr.mxu0 0.0
    %1201 = vmatpush1.msra.mxu0 0.0
    %1202 = vmatprep.subr.mxu0 0.0
    %1203 = vmatpush1.msra.mxu0 %v1167
    %1204 = vmatprep.subr.mxu0 0.0
    %1205 = vmatpush2.msra.mxu0 0.0
    %1206 = vmatprep.subr.mxu0 0.0
    %1207 = vmatpush2.msra.mxu0 0.0
    %1208 = vmatprep.subr.mxu0 0.0
    %1209 = vmatpush2.msra.mxu0 0.0
    %1210 = vmatprep.subr.mxu0 0.0
    %1211 = vmatpush2.msra.mxu0 0.0
    %1212 = vmatprep.subr.mxu0 0.0
    %1213 = vmatpush2.msra.mxu0 0.0
    %1214 = vmatprep.subr.mxu0 0.0
    %1215 = vmatpush2.msra.mxu0 0.0
    %1216 = vmatprep.subr.mxu0 0.0
    %1217 = vmatpush2.msra.mxu0 0.0
    %1218 = vmatprep.subr.mxu0 0.0
    %1219 = vmatpush2.msra.mxu0 0.0
    %1220 = vmatprep.subr.mxu0 0.0
    %1221 = vmatpush2.msra.mxu0 0.0
    %1222 = vmatprep.subr.mxu0 0.0
    %1223 = vmatpush2.msra.mxu0 0.0
    %1224 = vmatprep.subr.mxu0 0.0
    %1225 = vmatpush2.msra.mxu0 0.0
    %1226 = vmatprep.subr.mxu0 0.0
    %1227 = vmatpush2.msra.mxu0 0.0
    %1228 = vmatprep.subr.mxu0 0.0
    %1229 = vmatpush2.msra.mxu0 0.0
    %1230 = vmatprep.subr.mxu0 0.0
    %1231 = vmatpush2.msra.mxu0 0.0
    %1232 = vmatprep.subr.mxu0 0.0
    %1233 = vmatpush2.msra.mxu0 0.0
    %1234 = vmatprep.subr.mxu0 0.0
    %1235 = vmatpush2.msra.mxu0 0.0
    %1236 = vmatprep.mubr.f32.mxu0 0.0
    %1237 = vmatmul.mubr.f32.gmra.mxu0 %v1170
    %v1238 = vpop.f32.mrf.mxu0
    %v1239 = vadd.f32 0.0, %v1238
    %v1240 = vpop.f32.mrf.mxu0
    %1241 = vdwg.mxu0
    %1242 = vrot.lane.b32.xlu0 %v154, 48
    %v1243 = vpop.permute.xlu0 %1242
    %v1246 = vsel %vm164, %v1165, 0
    %1248 = vmatprep.subr.mxu0 0.0
    %1249 = vmatpush1.msra.mxu0 0.0
    %1250 = vmatprep.subr.mxu0 0.0
    %1251 = vmatpush1.msra.mxu0 0.0
    %1252 = vmatprep.subr.mxu0 0.0
    %1253 = vmatpush1.msra.mxu0 0.0
    %1254 = vmatprep.subr.mxu0 0.0
    %1255 = vmatpush1.msra.mxu0 0.0
    %1256 = vmatprep.subr.mxu0 0.0
    %1257 = vmatpush1.msra.mxu0 0.0
    %1258 = vmatprep.subr.mxu0 0.0
    %1259 = vmatpush1.msra.mxu0 0.0
    %1260 = vmatprep.subr.mxu0 0.0
    %1261 = vmatpush1.msra.mxu0 0.0
    %1262 = vmatprep.subr.mxu0 0.0
    %1263 = vmatpush1.msra.mxu0 0.0
    %1264 = vmatprep.subr.mxu0 0.0
    %1265 = vmatpush1.msra.mxu0 0.0
    %1266 = vmatprep.subr.mxu0 0.0
    %1267 = vmatpush1.msra.mxu0 0.0
    %1268 = vmatprep.subr.mxu0 0.0
    %1269 = vmatpush1.msra.mxu0 0.0
    %1270 = vmatprep.subr.mxu0 0.0
    %1271 = vmatpush1.msra.mxu0 0.0
    %1272 = vmatprep.subr.mxu0 0.0
    %1273 = vmatpush1.msra.mxu0 0.0
    %1274 = vmatprep.subr.mxu0 0.0
    %1275 = vmatpush1.msra.mxu0 0.0
    %1276 = vmatprep.subr.mxu0 0.0
    %1277 = vmatpush1.msra.mxu0 0.0
    %1278 = vmatprep.subr.mxu0 0.0
    %1279 = vmatpush1.msra.mxu0 %v1243
    %1280 = vmatprep.subr.mxu0 0.0
    %1281 = vmatpush2.msra.mxu0 0.0
    %1282 = vmatprep.subr.mxu0 0.0
    %1283 = vmatpush2.msra.mxu0 0.0
    %1284 = vmatprep.subr.mxu0 0.0
    %1285 = vmatpush2.msra.mxu0 0.0
    %1286 = vmatprep.subr.mxu0 0.0
    %1287 = vmatpush2.msra.mxu0 0.0
    %1288 = vmatprep.subr.mxu0 0.0
    %1289 = vmatpush2.msra.mxu0 0.0
    %1290 = vmatprep.subr.mxu0 0.0
    %1291 = vmatpush2.msra.mxu0 0.0
    %1292 = vmatprep.subr.mxu0 0.0
    %1293 = vmatpush2.msra.mxu0 0.0
    %1294 = vmatprep.subr.mxu0 0.0
    %1295 = vmatpush2.msra.mxu0 0.0
    %1296 = vmatprep.subr.mxu0 0.0
    %1297 = vmatpush2.msra.mxu0 0.0
    %1298 = vmatprep.subr.mxu0 0.0
    %1299 = vmatpush2.msra.mxu0 0.0
    %1300 = vmatprep.subr.mxu0 0.0
    %1301 = vmatpush2.msra.mxu0 0.0
    %1302 = vmatprep.subr.mxu0 0.0
    %1303 = vmatpush2.msra.mxu0 0.0
    %1304 = vmatprep.subr.mxu0 0.0
    %1305 = vmatpush2.msra.mxu0 0.0
    %1306 = vmatprep.subr.mxu0 0.0
    %1307 = vmatpush2.msra.mxu0 0.0
    %1308 = vmatprep.subr.mxu0 0.0
    %1309 = vmatpush2.msra.mxu0 0.0
    %1310 = vmatprep.subr.mxu0 0.0
    %1311 = vmatpush2.msra.mxu0 0.0
    %1312 = vmatprep.mubr.f32.mxu0 0.0
    %1313 = vmatmul.mubr.f32.gmra.mxu0 %v1246
    %v1314 = vpop.f32.mrf.mxu0
    %v1315 = vadd.f32 0.0, %v1314
    %v1316 = vpop.f32.mrf.mxu0
    %1317 = vdwg.mxu0
    %v1319 = vsel %vm164, %v1239, 0
    %v1322 = vsel %vm164, %v1315, 0
    %1324 = vmatprep.subr.mxu0 0.0
    %1325 = vmatpush1.msra.mxu0 0.0
    %1326 = vmatprep.subr.mxu0 0.0
    %1327 = vmatpush1.msra.mxu0 0.0
    %1328 = vmatprep.subr.mxu0 0.0
    %1329 = vmatpush1.msra.mxu0 0.0
    %1330 = vmatprep.subr.mxu0 0.0
    %1331 = vmatpush1.msra.mxu0 0.0
    %1332 = vmatprep.subr.mxu0 0.0
    %1333 = vmatpush1.msra.mxu0 0.0
    %1334 = vmatprep.subr.mxu0 0.0
    %1335 = vmatpush1.msra.mxu0 0.0
    %1336 = vmatprep.subr.mxu0 0.0
    %1337 = vmatpush1.msra.mxu0 0.0
    %1338 = vmatprep.subr.mxu0 0.0
    %1339 = vmatpush1.msra.mxu0 0.0
    %1340 = vmatprep.subr.mxu0 0.0
    %1341 = vmatpush1.msra.mxu0 0.0
    %1342 = vmatprep.subr.mxu0 0.0
    %1343 = vmatpush1.msra.mxu0 0.0
    %1344 = vmatprep.subr.mxu0 0.0
    %1345 = vmatpush1.msra.mxu0 0.0
    %1346 = vmatprep.subr.mxu0 0.0
    %1347 = vmatpush1.msra.mxu0 0.0
    %1348 = vmatprep.subr.mxu0 0.0
    %1349 = vmatpush1.msra.mxu0 0.0
    %1350 = vmatprep.subr.mxu0 0.0
    %1351 = vmatpush1.msra.mxu0 0.0
    %1352 = vmatprep.subr.mxu0 0.0
    %1353 = vmatpush1.msra.mxu0 0.0
    %1354 = vmatprep.subr.mxu0 0.0
    %1355 = vmatpush1.msra.mxu0 %v159
    %1356 = vmatprep.subr.mxu0 0.0
    %1357 = vmatpush2.msra.mxu0 0.0
    %1358 = vmatprep.subr.mxu0 0.0
    %1359 = vmatpush2.msra.mxu0 0.0
    %1360 = vmatprep.subr.mxu0 0.0
    %1361 = vmatpush2.msra.mxu0 0.0
    %1362 = vmatprep.subr.mxu0 0.0
    %1363 = vmatpush2.msra.mxu0 0.0
    %1364 = vmatprep.subr.mxu0 0.0
    %1365 = vmatpush2.msra.mxu0 0.0
    %1366 = vmatprep.subr.mxu0 0.0
    %1367 = vmatpush2.msra.mxu0 0.0
    %1368 = vmatprep.subr.mxu0 0.0
    %1369 = vmatpush2.msra.mxu0 0.0
    %1370 = vmatprep.subr.mxu0 0.0
    %1371 = vmatpush2.msra.mxu0 0.0
    %1372 = vmatprep.subr.mxu0 0.0
    %1373 = vmatpush2.msra.mxu0 0.0
    %1374 = vmatprep.subr.mxu0 0.0
    %1375 = vmatpush2.msra.mxu0 0.0
    %1376 = vmatprep.subr.mxu0 0.0
    %1377 = vmatpush2.msra.mxu0 0.0
    %1378 = vmatprep.subr.mxu0 0.0
    %1379 = vmatpush2.msra.mxu0 0.0
    %1380 = vmatprep.subr.mxu0 0.0
    %1381 = vmatpush2.msra.mxu0 0.0
    %1382 = vmatprep.subr.mxu0 0.0
    %1383 = vmatpush2.msra.mxu0 0.0
    %1384 = vmatprep.subr.mxu0 0.0
    %1385 = vmatpush2.msra.mxu0 0.0
    %1386 = vmatprep.subr.mxu0 0.0
    %1387 = vmatpush2.msra.mxu0 0.0
    %1388 = vmatprep.mubr.f32.mxu0 0.0
    %1389 = vmatmul.mubr.f32.gmra.mxu0 %v1319
    %v1390 = vpop.f32.mrf.mxu0
    %v1391 = vadd.f32 0.0, %v1390
    %v1392 = vpop.f32.mrf.mxu0
    %1393 = vmatprep.mubr.f32.mxu0 0.0
    %1394 = vmatmul.mubr.f32.gmra.mxu0 %v1322
    %v1395 = vpop.f32.mrf.mxu0
    %v1396 = vadd.f32 0.0, %v1395
    %v1397 = vpop.f32.mrf.mxu0
    %1398 = vdwg.mxu0
    %v1399 = vadd.f32 %v978, %v1391
    %v1400 = vadd.f32 %v983, %v1396
    %1401 = vrot.lane.b32.xlu0 %v149, 104
    %v1402 = vpop.permute.xlu0 %1401
    %1403 = vrot.lane.b32.xlu0 %v149, 72
    %v1404 = vpop.permute.xlu0 %1403
    %v1405 = vsel %vm164, %v1402, 0
    %v1407 = vsel %vm164, %v1404, 0
    %1409 = vmatprep.subr.mxu0 0.0
    %1410 = vmatpush1.xpose.msra.mxu0 0.0
    %1411 = vmatprep.subr.mxu0 0.0
    %1412 = vmatpush1.xpose.msra.mxu0 0.0
    %1413 = vmatprep.subr.mxu0 0.0
    %1414 = vmatpush1.xpose.msra.mxu0 0.0
    %1415 = vmatprep.subr.mxu0 0.0
    %1416 = vmatpush1.xpose.msra.mxu0 0.0
    %1417 = vmatprep.subr.mxu0 0.0
    %1418 = vmatpush1.xpose.msra.mxu0 0.0
    %1419 = vmatprep.subr.mxu0 0.0
    %1420 = vmatpush1.xpose.msra.mxu0 0.0
    %1421 = vmatprep.subr.mxu0 0.0
    %1422 = vmatpush1.xpose.msra.mxu0 0.0
    %1423 = vmatprep.subr.mxu0 0.0
    %1424 = vmatpush1.xpose.msra.mxu0 0.0
    %1425 = vmatprep.subr.mxu0 0.0
    %1426 = vmatpush1.xpose.msra.mxu0 0.0
    %1427 = vmatprep.subr.mxu0 0.0
    %1428 = vmatpush1.xpose.msra.mxu0 0.0
    %1429 = vmatprep.subr.mxu0 0.0
    %1430 = vmatpush1.xpose.msra.mxu0 0.0
    %1431 = vmatprep.subr.mxu0 0.0
    %1432 = vmatpush1.xpose.msra.mxu0 0.0
    %1433 = vmatprep.subr.mxu0 0.0
    %1434 = vmatpush1.xpose.msra.mxu0 0.0
    %1435 = vmatprep.subr.mxu0 0.0
    %1436 = vmatpush1.xpose.msra.mxu0 0.0
    %1437 = vmatprep.subr.mxu0 0.0
    %1438 = vmatpush1.xpose.msra.mxu0 0.0
    %1439 = vmatprep.subr.mxu0 0.0
    %1440 = vmatpush1.xpose.msra.mxu0 %v1407
    %1441 = vmatprep.subr.mxu0 0.0
    %1442 = vmatpush2.xpose.msra.mxu0 0.0
    %1443 = vmatprep.subr.mxu0 0.0
    %1444 = vmatpush2.xpose.msra.mxu0 0.0
    %1445 = vmatprep.subr.mxu0 0.0
    %1446 = vmatpush2.xpose.msra.mxu0 0.0
    %1447 = vmatprep.subr.mxu0 0.0
    %1448 = vmatpush2.xpose.msra.mxu0 0.0
    %1449 = vmatprep.subr.mxu0 0.0
    %1450 = vmatpush2.xpose.msra.mxu0 0.0
    %1451 = vmatprep.subr.mxu0 0.0
    %1452 = vmatpush2.xpose.msra.mxu0 0.0
    %1453 = vmatprep.subr.mxu0 0.0
    %1454 = vmatpush2.xpose.msra.mxu0 0.0
    %1455 = vmatprep.subr.mxu0 0.0
    %1456 = vmatpush2.xpose.msra.mxu0 0.0
    %1457 = vmatprep.subr.mxu0 0.0
    %1458 = vmatpush2.xpose.msra.mxu0 0.0
    %1459 = vmatprep.subr.mxu0 0.0
    %1460 = vmatpush2.xpose.msra.mxu0 0.0
    %1461 = vmatprep.subr.mxu0 0.0
    %1462 = vmatpush2.xpose.msra.mxu0 0.0
    %1463 = vmatprep.subr.mxu0 0.0
    %1464 = vmatpush2.xpose.msra.mxu0 0.0
    %1465 = vmatprep.subr.mxu0 0.0
    %1466 = vmatpush2.xpose.msra.mxu0 0.0
    %1467 = vmatprep.subr.mxu0 0.0
    %1468 = vmatpush2.xpose.msra.mxu0 0.0
    %1469 = vmatprep.subr.mxu0 0.0
    %1470 = vmatpush2.xpose.msra.mxu0 0.0
    %1471 = vmatprep.subr.mxu0 0.0
    %1472 = vmatpush2.xpose.msra.mxu0 0.0
    %1473 = vmatprep.mubr.f32.mxu0 0.0
    %1474 = vmatmul.mubr.f32.gmra.mxu0 %v1405
    %v1475 = vpop.f32.mrf.mxu0
    %v1476 = vadd.f32 0.0, %v1475
    %v1477 = vpop.f32.mrf.mxu0
    %1478 = vdwg.mxu0
    %1479 = vrot.lane.b32.xlu0 %v154, 104
    %v1480 = vpop.permute.xlu0 %1479
    %1481 = vrot.lane.b32.xlu0 %v154, 72
    %v1482 = vpop.permute.xlu0 %1481
    %v1483 = vsel %vm164, %v1480, 0
    %v1485 = vsel %vm164, %v1482, 0
    %1487 = vmatprep.subr.mxu0 0.0
    %1488 = vmatpush1.xpose.msra.mxu0 0.0
    %1489 = vmatprep.subr.mxu0 0.0
    %1490 = vmatpush1.xpose.msra.mxu0 0.0
    %1491 = vmatprep.subr.mxu0 0.0
    %1492 = vmatpush1.xpose.msra.mxu0 0.0
    %1493 = vmatprep.subr.mxu0 0.0
    %1494 = vmatpush1.xpose.msra.mxu0 0.0
    %1495 = vmatprep.subr.mxu0 0.0
    %1496 = vmatpush1.xpose.msra.mxu0 0.0
    %1497 = vmatprep.subr.mxu0 0.0
    %1498 = vmatpush1.xpose.msra.mxu0 0.0
    %1499 = vmatprep.subr.mxu0 0.0
    %1500 = vmatpush1.xpose.msra.mxu0 0.0
    %1501 = vmatprep.subr.mxu0 0.0
    %1502 = vmatpush1.xpose.msra.mxu0 0.0
    %1503 = vmatprep.subr.mxu0 0.0
    %1504 = vmatpush1.xpose.msra.mxu0 0.0
    %1505 = vmatprep.subr.mxu0 0.0
    %1506 = vmatpush1.xpose.msra.mxu0 0.0
    %1507 = vmatprep.subr.mxu0 0.0
    %1508 = vmatpush1.xpose.msra.mxu0 0.0
    %1509 = vmatprep.subr.mxu0 0.0
    %1510 = vmatpush1.xpose.msra.mxu0 0.0
    %1511 = vmatprep.subr.mxu0 0.0
    %1512 = vmatpush1.xpose.msra.mxu0 0.0
    %1513 = vmatprep.subr.mxu0 0.0
    %1514 = vmatpush1.xpose.msra.mxu0 0.0
    %1515 = vmatprep.subr.mxu0 0.0
    %1516 = vmatpush1.xpose.msra.mxu0 0.0
    %1517 = vmatprep.subr.mxu0 0.0
    %1518 = vmatpush1.xpose.msra.mxu0 %v1485
    %1519 = vmatprep.subr.mxu0 0.0
    %1520 = vmatpush2.xpose.msra.mxu0 0.0
    %1521 = vmatprep.subr.mxu0 0.0
    %1522 = vmatpush2.xpose.msra.mxu0 0.0
    %1523 = vmatprep.subr.mxu0 0.0
    %1524 = vmatpush2.xpose.msra.mxu0 0.0
    %1525 = vmatprep.subr.mxu0 0.0
    %1526 = vmatpush2.xpose.msra.mxu0 0.0
    %1527 = vmatprep.subr.mxu0 0.0
    %1528 = vmatpush2.xpose.msra.mxu0 0.0
    %1529 = vmatprep.subr.mxu0 0.0
    %1530 = vmatpush2.xpose.msra.mxu0 0.0
    %1531 = vmatprep.subr.mxu0 0.0
    %1532 = vmatpush2.xpose.msra.mxu0 0.0
    %1533 = vmatprep.subr.mxu0 0.0
    %1534 = vmatpush2.xpose.msra.mxu0 0.0
    %1535 = vmatprep.subr.mxu0 0.0
    %1536 = vmatpush2.xpose.msra.mxu0 0.0
    %1537 = vmatprep.subr.mxu0 0.0
    %1538 = vmatpush2.xpose.msra.mxu0 0.0
    %1539 = vmatprep.subr.mxu0 0.0
    %1540 = vmatpush2.xpose.msra.mxu0 0.0
    %1541 = vmatprep.subr.mxu0 0.0
    %1542 = vmatpush2.xpose.msra.mxu0 0.0
    %1543 = vmatprep.subr.mxu0 0.0
    %1544 = vmatpush2.xpose.msra.mxu0 0.0
    %1545 = vmatprep.subr.mxu0 0.0
    %1546 = vmatpush2.xpose.msra.mxu0 0.0
    %1547 = vmatprep.subr.mxu0 0.0
    %1548 = vmatpush2.xpose.msra.mxu0 0.0
    %1549 = vmatprep.subr.mxu0 0.0
    %1550 = vmatpush2.xpose.msra.mxu0 0.0
    %1551 = vmatprep.mubr.f32.mxu0 0.0
    %1552 = vmatmul.mubr.f32.gmra.mxu0 %v1483
    %v1553 = vpop.f32.mrf.mxu0
    %v1554 = vadd.f32 0.0, %v1553
    %v1555 = vpop.f32.mrf.mxu0
    %1556 = vdwg.mxu0
    %v1557 = vmul.f32 %v1476, 0.35355338
    %v1558 = vmul.f32 %v1554, 0.35355338
    %v1559 = vsel %vm164, %v1557, -inf
    %1560 = vmax.xlane.f32.xlu0 %v1559
    %v1561 = vpop.xlane.xlu0 %1560
    %v1562 = vsel %vm164, %v1558, -inf
    %1563 = vmax.xlane.f32.xlu0 %v1562
    %v1564 = vpop.xlane.xlu0 %1563
    %v1565 = vsub.f32 %v1557, %v1561
    %v1566 = vsub.f32 %v1558, %v1564
    %v1567 = vmul.f32 %v1565, 1.442695
    %v1568 = vpow.pop %v1567
    %v1569 = vmul.f32 %v1566, 1.442695
    %v1570 = vpow.pop %v1569
    %v1571 = vsel %vm164, %v1568, 0.0
    %1572 = vadd.xlane.f32.xlu0 %v1571
    %v1573 = vpop.xlane.xlu0 %1572
    %v1574 = vsel %vm164, %v1570, 0.0
    %1575 = vadd.xlane.f32.xlu0 %v1574
    %v1576 = vpop.xlane.xlu0 %1575
    %v1577 = vrcp.pop %v1573
    %v1578 = vrcp.pop %v1576
    %v1579 = vmul.f32 %v1568, %v1577
    %v1580 = vmul.f32 %v1570, %v1578
    %1581 = vrot.lane.b32.xlu0 %v149, 40
    %v1582 = vpop.permute.xlu0 %1581
    %v1585 = vsel %vm164, %v1579, 0
    %1587 = vmatprep.subr.mxu0 0.0
    %1588 = vmatpush1.msra.mxu0 0.0
    %1589 = vmatprep.subr.mxu0 0.0
    %1590 = vmatpush1.msra.mxu0 0.0
    %1591 = vmatprep.subr.mxu0 0.0
    %1592 = vmatpush1.msra.mxu0 0.0
    %1593 = vmatprep.subr.mxu0 0.0
    %1594 = vmatpush1.msra.mxu0 0.0
    %1595 = vmatprep.subr.mxu0 0.0
    %1596 = vmatpush1.msra.mxu0 0.0
    %1597 = vmatprep.subr.mxu0 0.0
    %1598 = vmatpush1.msra.mxu0 0.0
    %1599 = vmatprep.subr.mxu0 0.0
    %1600 = vmatpush1.msra.mxu0 0.0
    %1601 = vmatprep.subr.mxu0 0.0
    %1602 = vmatpush1.msra.mxu0 0.0
    %1603 = vmatprep.subr.mxu0 0.0
    %1604 = vmatpush1.msra.mxu0 0.0
    %1605 = vmatprep.subr.mxu0 0.0
    %1606 = vmatpush1.msra.mxu0 0.0
    %1607 = vmatprep.subr.mxu0 0.0
    %1608 = vmatpush1.msra.mxu0 0.0
    %1609 = vmatprep.subr.mxu0 0.0
    %1610 = vmatpush1.msra.mxu0 0.0
    %1611 = vmatprep.subr.mxu0 0.0
    %1612 = vmatpush1.msra.mxu0 0.0
    %1613 = vmatprep.subr.mxu0 0.0
    %1614 = vmatpush1.msra.mxu0 0.0
    %1615 = vmatprep.subr.mxu0 0.0
    %1616 = vmatpush1.msra.mxu0 0.0
    %1617 = vmatprep.subr.mxu0 0.0
    %1618 = vmatpush1.msra.mxu0 %v1582
    %1619 = vmatprep.subr.mxu0 0.0
    %1620 = vmatpush2.msra.mxu0 0.0
    %1621 = vmatprep.subr.mxu0 0.0
    %1622 = vmatpush2.msra.mxu0 0.0
    %1623 = vmatprep.subr.mxu0 0.0
    %1624 = vmatpush2.msra.mxu0 0.0
    %1625 = vmatprep.subr.mxu0 0.0
    %1626 = vmatpush2.msra.mxu0 0.0
    %1627 = vmatprep.subr.mxu0 0.0
    %1628 = vmatpush2.msra.mxu0 0.0
    %1629 = vmatprep.subr.mxu0 0.0
    %1630 = vmatpush2.msra.mxu0 0.0
    %1631 = vmatprep.subr.mxu0 0.0
    %1632 = vmatpush2.msra.mxu0 0.0
    %1633 = vmatprep.subr.mxu0 0.0
    %1634 = vmatpush2.msra.mxu0 0.0
    %1635 = vmatprep.subr.mxu0 0.0
    %1636 = vmatpush2.msra.mxu0 0.0
    %1637 = vmatprep.subr.mxu0 0.0
    %1638 = vmatpush2.msra.mxu0 0.0
    %1639 = vmatprep.subr.mxu0 0.0
    %1640 = vmatpush2.msra.mxu0 0.0
    %1641 = vmatprep.subr.mxu0 0.0
    %1642 = vmatpush2.msra.mxu0 0.0
    %1643 = vmatprep.subr.mxu0 0.0
    %1644 = vmatpush2.msra.mxu0 0.0
    %1645 = vmatprep.subr.mxu0 0.0
    %1646 = vmatpush2.msra.mxu0 0.0
    %1647 = vmatprep.subr.mxu0 0.0
    %1648 = vmatpush2.msra.mxu0 0.0
    %1649 = vmatprep.subr.mxu0 0.0
    %1650 = vmatpush2.msra.mxu0 0.0
    %1651 = vmatprep.mubr.f32.mxu0 0.0
    %1652 = vmatmul.mubr.f32.gmra.mxu0 %v1585
    %v1653 = vpop.f32.mrf.mxu0
    %v1654 = vadd.f32 0.0, %v1653
    %v1655 = vpop.f32.mrf.mxu0
    %1656 = vdwg.mxu0
    %1657 = vrot.lane.b32.xlu0 %v154, 40
    %v1658 = vpop.permute.xlu0 %1657
    %v1661 = vsel %vm164, %v1580, 0
    %1663 = vmatprep.subr.mxu0 0.0
    %1664 = vmatpush1.msra.mxu0 0.0
    %1665 = vmatprep.subr.mxu0 0.0
    %1666 = vmatpush1.msra.mxu0 0.0
    %1667 = vmatprep.subr.mxu0 0.0
    %1668 = vmatpush1.msra.mxu0 0.0
    %1669 = vmatprep.subr.mxu0 0.0
    %1670 = vmatpush1.msra.mxu0 0.0
    %1671 = vmatprep.subr.mxu0 0.0
    %1672 = vmatpush1.msra.mxu0 0.0
    %1673 = vmatprep.subr.mxu0 0.0
    %1674 = vmatpush1.msra.mxu0 0.0
    %1675 = vmatprep.subr.mxu0 0.0
    %1676 = vmatpush1.msra.mxu0 0.0
    %1677 = vmatprep.subr.mxu0 0.0
    %1678 = vmatpush1.msra.mxu0 0.0
    %1679 = vmatprep.subr.mxu0 0.0
    %1680 = vmatpush1.msra.mxu0 0.0
    %1681 = vmatprep.subr.mxu0 0.0
    %1682 = vmatpush1.msra.mxu0 0.0
    %1683 = vmatprep.subr.mxu0 0.0
    %1684 = vmatpush1.msra.mxu0 0.0
    %1685 = vmatprep.subr.mxu0 0.0
    %1686 = vmatpush1.msra.mxu0 0.0
    %1687 = vmatprep.subr.mxu0 0.0
    %1688 = vmatpush1.msra.mxu0 0.0
    %1689 = vmatprep.subr.mxu0 0.0
    %1690 = vmatpush1.msra.mxu0 0.0
    %1691 = vmatprep.subr.mxu0 0.0
    %1692 = vmatpush1.msra.mxu0 0.0
    %1693 = vmatprep.subr.mxu0 0.0
    %1694 = vmatpush1.msra.mxu0 %v1658
    %1695 = vmatprep.subr.mxu0 0.0
    %1696 = vmatpush2.msra.mxu0 0.0
    %1697 = vmatprep.subr.mxu0 0.0
    %1698 = vmatpush2.msra.mxu0 0.0
    %1699 = vmatprep.subr.mxu0 0.0
    %1700 = vmatpush2.msra.mxu0 0.0
    %1701 = vmatprep.subr.mxu0 0.0
    %1702 = vmatpush2.msra.mxu0 0.0
    %1703 = vmatprep.subr.mxu0 0.0
    %1704 = vmatpush2.msra.mxu0 0.0
    %1705 = vmatprep.subr.mxu0 0.0
    %1706 = vmatpush2.msra.mxu0 0.0
    %1707 = vmatprep.subr.mxu0 0.0
    %1708 = vmatpush2.msra.mxu0 0.0
    %1709 = vmatprep.subr.mxu0 0.0
    %1710 = vmatpush2.msra.mxu0 0.0
    %1711 = vmatprep.subr.mxu0 0.0
    %1712 = vmatpush2.msra.mxu0 0.0
    %1713 = vmatprep.subr.mxu0 0.0
    %1714 = vmatpush2.msra.mxu0 0.0
    %1715 = vmatprep.subr.mxu0 0.0
    %1716 = vmatpush2.msra.mxu0 0.0
    %1717 = vmatprep.subr.mxu0 0.0
    %1718 = vmatpush2.msra.mxu0 0.0
    %1719 = vmatprep.subr.mxu0 0.0
    %1720 = vmatpush2.msra.mxu0 0.0
    %1721 = vmatprep.subr.mxu0 0.0
    %1722 = vmatpush2.msra.mxu0 0.0
    %1723 = vmatprep.subr.mxu0 0.0
    %1724 = vmatpush2.msra.mxu0 0.0
    %1725 = vmatprep.subr.mxu0 0.0
    %1726 = vmatpush2.msra.mxu0 0.0
    %1727 = vmatprep.mubr.f32.mxu0 0.0
    %1728 = vmatmul.mubr.f32.gmra.mxu0 %v1661
    %v1729 = vpop.f32.mrf.mxu0
    %v1730 = vadd.f32 0.0, %v1729
    %v1731 = vpop.f32.mrf.mxu0
    %1732 = vdwg.mxu0
    %v1734 = vsel %vm164, %v1654, 0
    %v1737 = vsel %vm164, %v1730, 0
    %1739 = vmatprep.subr.mxu0 0.0
    %1740 = vmatpush1.msra.mxu0 0.0
    %1741 = vmatprep.subr.mxu0 0.0
    %1742 = vmatpush1.msra.mxu0 0.0
    %1743 = vmatprep.subr.mxu0 0.0
    %1744 = vmatpush1.msra.mxu0 0.0
    %1745 = vmatprep.subr.mxu0 0.0
    %1746 = vmatpush1.msra.mxu0 0.0
    %1747 = vmatprep.subr.mxu0 0.0
    %1748 = vmatpush1.msra.mxu0 0.0
    %1749 = vmatprep.subr.mxu0 0.0
    %1750 = vmatpush1.msra.mxu0 0.0
    %1751 = vmatprep.subr.mxu0 0.0
    %1752 = vmatpush1.msra.mxu0 0.0
    %1753 = vmatprep.subr.mxu0 0.0
    %1754 = vmatpush1.msra.mxu0 0.0
    %1755 = vmatprep.subr.mxu0 0.0
    %1756 = vmatpush1.msra.mxu0 0.0
    %1757 = vmatprep.subr.mxu0 0.0
    %1758 = vmatpush1.msra.mxu0 0.0
    %1759 = vmatprep.subr.mxu0 0.0
    %1760 = vmatpush1.msra.mxu0 0.0
    %1761 = vmatprep.subr.mxu0 0.0
    %1762 = vmatpush1.msra.mxu0 0.0
    %1763 = vmatprep.subr.mxu0 0.0
    %1764 = vmatpush1.msra.mxu0 0.0
    %1765 = vmatprep.subr.mxu0 0.0
    %1766 = vmatpush1.msra.mxu0 0.0
    %1767 = vmatprep.subr.mxu0 0.0
    %1768 = vmatpush1.msra.mxu0 0.0
    %1769 = vmatprep.subr.mxu0 0.0
    %1770 = vmatpush1.msra.mxu0 %v160
    %1771 = vmatprep.subr.mxu0 0.0
    %1772 = vmatpush2.msra.mxu0 0.0
    %1773 = vmatprep.subr.mxu0 0.0
    %1774 = vmatpush2.msra.mxu0 0.0
    %1775 = vmatprep.subr.mxu0 0.0
    %1776 = vmatpush2.msra.mxu0 0.0
    %1777 = vmatprep.subr.mxu0 0.0
    %1778 = vmatpush2.msra.mxu0 0.0
    %1779 = vmatprep.subr.mxu0 0.0
    %1780 = vmatpush2.msra.mxu0 0.0
    %1781 = vmatprep.subr.mxu0 0.0
    %1782 = vmatpush2.msra.mxu0 0.0
    %1783 = vmatprep.subr.mxu0 0.0
    %1784 = vmatpush2.msra.mxu0 0.0
    %1785 = vmatprep.subr.mxu0 0.0
    %1786 = vmatpush2.msra.mxu0 0.0
    %1787 = vmatprep.subr.mxu0 0.0
    %1788 = vmatpush2.msra.mxu0 0.0
    %1789 = vmatprep.subr.mxu0 0.0
    %1790 = vmatpush2.msra.mxu0 0.0
    %1791 = vmatprep.subr.mxu0 0.0
    %1792 = vmatpush2.msra.mxu0 0.0
    %1793 = vmatprep.subr.mxu0 0.0
    %1794 = vmatpush2.msra.mxu0 0.0
    %1795 = vmatprep.subr.mxu0 0.0
    %1796 = vmatpush2.msra.mxu0 0.0
    %1797 = vmatprep.subr.mxu0 0.0
    %1798 = vmatpush2.msra.mxu0 0.0
    %1799 = vmatprep.subr.mxu0 0.0
    %1800 = vmatpush2.msra.mxu0 0.0
    %1801 = vmatprep.subr.mxu0 0.0
    %1802 = vmatpush2.msra.mxu0 0.0
    %1803 = vmatprep.mubr.f32.mxu0 0.0
    %1804 = vmatmul.mubr.f32.gmra.mxu0 %v1734
    %v1805 = vpop.f32.mrf.mxu0
    %v1806 = vadd.f32 0.0, %v1805
    %v1807 = vpop.f32.mrf.mxu0
    %1808 = vmatprep.mubr.f32.mxu0 0.0
    %1809 = vmatmul.mubr.f32.gmra.mxu0 %v1737
    %v1810 = vpop.f32.mrf.mxu0
    %v1811 = vadd.f32 0.0, %v1810
    %v1812 = vpop.f32.mrf.mxu0
    %1813 = vdwg.mxu0
    %v1814 = vadd.f32 %v1399, %v1806
    %v1815 = vadd.f32 %v1400, %v1811
    %v1816 = vld [vmem:[%s4] sm:$0x7]
    %v1817 = vadd.f32 %v62, %v1814
    %v1818 = vadd.f32 %v63, %v1815
    %v1819 = vlaneseq
    %v1820 = vshrl.u32 %v1819, 7
    %v1821 = vsub.s32 0, %v1820
    %v1822 = vrot.slane %v1816, %v1821
    %v1823 = vadd.f32 %v1817, %v1822
    %v1824 = vadd.f32 %v1818, %v1822
    %v1825 = vsel %vm75, %v1823, 0.0
    %1826 = vadd.xlane.f32.xlu0 %v1825
    %v1827 = vpop.xlane.xlu0 %1826
    %v1828 = vsel %vm75, %v1824, 0.0
    %1829 = vadd.xlane.f32.xlu0 %v1828
    %v1830 = vpop.xlane.xlu0 %1829
    %v1831 = vrcp.pop 32.0
    %v1832 = vmul.f32 %v1827, %v1831
    %v1833 = vmul.f32 %v1830, %v1831
    %v1834 = vsub.f32 %v1823, %v1832
    %v1835 = vsub.f32 %v1824, %v1833
    %v1836 = vmul.f32 %v1834, %v1834
    %v1837 = vmul.f32 %v1835, %v1835
    %v1838 = vsel %vm75, %v1836, 0.0
    %1839 = vadd.xlane.f32.xlu0 %v1838
    %v1840 = vpop.xlane.xlu0 %1839
    %v1841 = vsel %vm75, %v1837, 0.0
    %1842 = vadd.xlane.f32.xlu0 %v1841
    %v1843 = vpop.xlane.xlu0 %1842
    %v1844 = vmul.f32 %v1840, %v1831
    %v1845 = vmul.f32 %v1843, %v1831
    %v1846 = vadd.f32 %v1844, 1e-05
    %v1847 = vadd.f32 %v1845, 1e-05
    %v1848 = vrsqrt.pop %v1846
    %v1849 = vrsqrt.pop %v1847
    %v1850 = vmul.f32 %v1834, %v1848
    %v1851 = vmul.f32 %v1835, %v1849
    %v1852 = vlaneseq
    %v1853 = vshrl.u32 %v1852, 7
    %v1854 = vsub.s32 1, %v1853
    %v1855 = vrot.slane %v1816, %v1854
    %v1856 = vmul.f32 %v1850, %v1855
    %v1857 = vmul.f32 %v1851, %v1855
    %v1858 = vlaneseq
    %v1859 = vshrl.u32 %v1858, 7
    %v1860 = vsub.s32 2, %v1859
    %v1861 = vrot.slane %v1816, %v1860
    %v1862 = vadd.f32 %v1856, %v1861
    %v1863 = vadd.f32 %v1857, %v1861
    %1864 = vst.msk [vmem:[#allocation8] sm:$0xff] %vm75, %v1862
    %1865 = vst.msk [vmem:[#allocation8 + $0x8] sm:$0xff] %vm75, %v1863
    // Predicated region
    $region34: #{tpu_custom_call.1} parent=1 // pred_check
      _
    $region35: #{tpu_custom_call.1} parent=1 // pred_check_branch
      %1867 = sbr.rel (0) target = $region37
    $region36: #{tpu_custom_call.1} parent=1 // pred_region
      %s1869 = ssub.s32 256, 256
      %1870 = vsyncadd [#allocation4], %s1869
      %s1871 = sshll.u32 [#allocation8], 4
      %s1872 = int_to_ptr.vmem [resolvable:$true] %s1871
      %1877 = dma.vmem_to_hbm [thread:$0]  %s1872, 256, %s5, [#allocation4], 128, 128, 8
    $region37: #{tpu_custom_call.1} parent=1 // pred_fallthru
      _
    // Predicated region
    $region38: #{tpu_custom_call.1} parent=1 // pred_check
      _
    $region39: #{tpu_custom_call.1} parent=1 // pred_check_branch
      %1879 = sbr.rel (0) target = $region41
    $region40: #{tpu_custom_call.1} parent=1 // pred_region
      %1880 = dma.done [#allocation4], 256
    $region41: #{tpu_custom_call.1} parent=1 // pred_fallthru
      _
    %1881 = vsyncpa [#allocation3], 1
    %1882 = vsyncpa [#allocation6], 1
    %1883 = vsyncpa [#allocation4], 1

</llo_original>
